<compile_context>
chip_gen: v7x
topology: tpu7x:2x2x1
jax: 0.10.0
libtpu: 0.0.40
codegen_flags: <defaults>
</compile_context>

<pallas_src>
import functools
import math

import jax
import jax.numpy as jnp
from jax import lax
from jax.experimental import pallas as pl
from jax.experimental.pallas import tpu as pltpu


# ---------------------------------------------------------------------------
# in-kernel math helpers (also used by the pure-JAX reference)
# ---------------------------------------------------------------------------
def _layernorm(x, g, b, eps):
    mu = jnp.mean(x, axis=-1, keepdims=True)
    var = jnp.mean((x - mu) ** 2, axis=-1, keepdims=True)
    return (x - mu) * lax.rsqrt(var + eps) * g + b


def _gelu_exact(x):
    # torch nn.GELU() default = exact erf-based GELU
    return 0.5 * x * (1.0 + lax.erf(x * 0.7071067811865476))


# ---------------------------------------------------------------------------
# small utilities
# ---------------------------------------------------------------------------
def _pick_tile(n, max_tile, multiple):
    """Largest divisor of n that is <= max_tile and a multiple of `multiple`,
    else n itself (full extent is always a legal block dim)."""
    if n <= max_tile:
        return n
    for t in range(max_tile, multiple - 1, -1):
        if n % t == 0 and t % multiple == 0:
            return t
    return n


def _nbytes(a):
    return int(a.size) * a.dtype.itemsize


def _buffered_supported():
    try:
        s = pl.BlockSpec((8, 128), lambda i: (0, 0), pipeline_mode=pl.Buffered(1))
        return getattr(s, "pipeline_mode", None) is not None
    except Exception:
        return False


_HAS_BUFFERED = _buffered_supported()


def _make_spec(shape, index_map, buffers=None):
    """BlockSpec with optional explicit buffer count (single-buffer invariant
    inputs to save VMEM); falls back to the default spec if unsupported."""
    if buffers is not None and _HAS_BUFFERED:
        try:
            return pl.BlockSpec(shape, index_map, pipeline_mode=pl.Buffered(buffers))
        except Exception:
            pass
    return pl.BlockSpec(shape, index_map)


def _rep_spec(a, grid_rank, buffers=1):
    """Whole-array block, replicated (constant block index) across the grid.
    Single-buffered by default: the block is never re-fetched."""
    nd = a.ndim
    if grid_rank == 2:
        index_map = lambda i, j: (0,) * nd
    elif grid_rank == 3:
        index_map = lambda i, j, k: (0,) * nd
    else:
        index_map = lambda i: (0,) * nd
    return _make_spec(a.shape, index_map, buffers)


_VMEM_CAP = None


def _vmem_cap():
    """Per-generation VMEM budget: 75% of physical (≈96 MiB on v5e/v6e,
    ≈48 MiB on v7x).  Conservative 48 MiB fallback if the query fails."""
    global _VMEM_CAP
    if _VMEM_CAP is None:
        try:
            info = pltpu.get_tpu_info()
            phys = int(info.vmem_capacity_bytes)
            _VMEM_CAP = max(32 * 1024 * 1024, (phys * 3) // 4)
        except Exception:
            _VMEM_CAP = 48 * 1024 * 1024
    return _VMEM_CAP


def _compiler_params(semantics, need_bytes):
    cap = _vmem_cap()
    limit = int(min(cap, max(32 * 1024 * 1024, int(need_bytes) + (8 << 20))))
    return pltpu.CompilerParams(dimension_semantics=tuple(semantics),
                                vmem_limit_bytes=limit)


def _attn_tile(T, C, H, hd, cap):
    """Pick the query tile so the attention kernel's resident set fits the
    per-generation VMEM budget (smaller tq on v7x, bigger on v5e/v6e)."""
    tq = _pick_tile(T, 512, 16)

    def need(t):
        return (4 * t * C * 4                    # x in + out (double buffered)
                + 2 * H * t * hd * 2             # q tile (double buffered)
                + 2 * H * T * hd * 2             # resident K + V (single buffered)
                + 20 * C * C * 2                 # weights (single buffered)
                + 3 * H * t * T * 4              # scores + exp + bf16 copy
                + 2 * t * 4 * C * 4)             # MLP intermediate

    while (tq >= 128 and need(tq) > int(cap * 0.8)
           and T % (tq // 2) == 0 and (tq // 2) % 16 == 0):
        tq //= 2
    return tq


# ---------------------------------------------------------------------------
# Pallas kernels
# ---------------------------------------------------------------------------
def qkv_kernel(eps, scale, H, hd, C,
               x_ref, ln1g_ref, ln1b_ref, wqkv_ref, bqkv_ref,
               q_ref, k_ref, v_ref):
    x = x_ref[0]                                                   # (TQ, C) f32
    xn = _layernorm(x, ln1g_ref[...], ln1b_ref[...], eps).astype(jnp.bfloat16)
    # single fused QKV projection: one deep (TQ,C)x(C,3C) MXU matmul
    qkv = (jnp.dot(xn, wqkv_ref[...], preferred_element_type=jnp.float32)
           + bqkv_ref[...])                                        # (TQ, 3C) f32
    qf = qkv[:, :C] * scale          # fold 1/sqrt(hd) into q once (before bf16)
    kf = qkv[:, C:2 * C]
    vf = qkv[:, 2 * C:3 * C]
    # head-split writes via static lane slices -> outputs are already
    # (B, H, T, hd); no XLA-side transpose / HBM round trip between kernels.
    for h in range(H):
        sl = slice(h * hd, (h + 1) * hd)
        q_ref[0, h] = qf[:, sl].astype(jnp.bfloat16)
        k_ref[0, h] = kf[:, sl].astype(jnp.bfloat16)
        v_ref[0, h] = vf[:, sl].astype(jnp.bfloat16)


def attn_mlp_kernel(eps, tq,
                    x_ref, q_ref, k_ref, v_ref,
                    wp_ref, bp_ref, ln2g_ref, ln2b_ref,
                    w1_ref, b1_ref, w2_ref, b2_ref,
                    o_ref):
    x = x_ref[0]                          # (TQ, C)     f32
    q = q_ref[0]                          # (H, TQ, hd) bf16, pre-scaled
    k = k_ref[0]                          # (H, T, hd)  bf16
    v = v_ref[0]                          # (H, T, hd)  bf16
    H, _, hd = q.shape
    T = k.shape[1]

    # additive causal bias, computed once and shared by all heads
    q_start = pl.program_id(1) * tq
    row = lax.broadcasted_iota(jnp.int32, (tq, T), 0) + q_start
    col = lax.broadcasted_iota(jnp.int32, (tq, T), 1)
    bias = jnp.where(row >= col, 0.0, -1e30).astype(jnp.float32)   # (TQ, T)

    # batched-head attention (one matmul stream per head, no concat of scores)
    att = jnp.einsum('hqd,hkd->hqk', q, k,
                     preferred_element_type=jnp.float32) + bias    # (H, TQ, T)
    att = att - jnp.max(att, axis=-1, keepdims=True)
    p = jnp.exp(att)
    p = p * pl.reciprocal(jnp.sum(p, axis=-1, keepdims=True), approx=True)
    y = jnp.einsum('hqk,hkd->hqd', p.astype(jnp.bfloat16), v,
                   preferred_element_type=jnp.float32)             # (H, TQ, hd)

    # concat heads (static lane concat) then ONE deep K=C projection matmul;
    # no (H, TQ, C) temporary and no VPU cross-head sum.
    y_cat = jnp.concatenate([y[h] for h in range(H)], axis=-1)     # (TQ, C)
    attn_out = (jnp.dot(y_cat.astype(jnp.bfloat16), wp_ref[...],
                        preferred_element_type=jnp.float32) + bp_ref[...])
    x1 = x + attn_out

    # MLP branch
    xn2 = _layernorm(x1, ln2g_ref[...], ln2b_ref[...], eps).astype(jnp.bfloat16)
    h1 = jnp.dot(xn2, w1_ref[...], preferred_element_type=jnp.float32) + b1_ref[...]
    h1 = _gelu_exact(h1).astype(jnp.bfloat16)
    mlp_out = jnp.dot(h1, w2_ref[...], preferred_element_type=jnp.float32) + b2_ref[...]

    o_ref[0] = x1 + mlp_out


def lm_head_kernel(x_ref, w_ref, b_ref, o_ref):
    # x is already bf16 (cast once in the wrapper), W is bf16, f32 accumulate
    o_ref[0] = (jnp.dot(x_ref[0], w_ref[...], preferred_element_type=jnp.float32)
                + b_ref[...])


# ---------------------------------------------------------------------------
# wrappers
# ---------------------------------------------------------------------------
def qkv_project(x, p, eps, scale, tq, n_heads):
    B, T, C = x.shape
    hd = C // n_heads
    grid = (B, T // tq)
    x_spec = pl.BlockSpec((1, tq, C), lambda b, t: (b, t, 0))
    o_spec = pl.BlockSpec((1, n_heads, tq, hd), lambda b, t: (b, 0, t, 0))
    w_bytes = sum(_nbytes(w) for w in p)
    blk_bytes = (2 * tq * C * 4 + w_bytes
                 + 3 * 2 * n_heads * tq * hd * 2 + tq * 3 * C * 4)
    flops = 2 * B * T * C * 3 * C
    bytes_accessed = B * T * C * 4 + w_bytes + 3 * B * T * C * 2
    out_sd = jax.ShapeDtypeStruct((B, n_heads, T, hd), jnp.bfloat16)
    return pl.pallas_call(
        functools.partial(qkv_kernel, eps, scale, n_heads, hd, C),
        grid=grid,
        in_specs=[x_spec] + [_rep_spec(w, 2) for w in p],
        out_specs=(o_spec, o_spec, o_spec),
        out_shape=(out_sd, out_sd, out_sd),
        compiler_params=_compiler_params(("parallel", "parallel"), blk_bytes),
        cost_estimate=pl.CostEstimate(flops=int(flops),
                                      transcendentals=int(B * T),
                                      bytes_accessed=int(bytes_accessed)),
    )(x, *p)


def attn_mlp(x, q, k, v, p, eps, tq):
    B, T, C = x.shape
    H, hd = q.shape[1], q.shape[3]
    grid = (B, T // tq)
    in_specs = [
        pl.BlockSpec((1, tq, C), lambda b, i: (b, i, 0)),                # x tile
        pl.BlockSpec((1, H, tq, hd), lambda b, i: (b, 0, i, 0)),         # q tile
        _make_spec((1, H, T, hd), lambda b, i: (b, 0, 0, 0), buffers=1),  # K resident
        _make_spec((1, H, T, hd), lambda b, i: (b, 0, 0, 0), buffers=1),  # V resident
    ] + [_rep_spec(w, 2) for w in p]
    o_spec = pl.BlockSpec((1, tq, C), lambda b, i: (b, i, 0))
    w_bytes = sum(_nbytes(w) for w in p)
    blk_bytes = (4 * tq * C * 4                        # x in / out
                 + 2 * H * tq * hd * 2                 # q tile
                 + 2 * H * T * hd * 2                  # resident K/V (1 buf)
                 + w_bytes
                 + 3 * H * tq * T * 4                  # score temporaries
                 + 2 * tq * 4 * C * 4)                 # MLP intermediate
    flops = 4 * B * H * T * T * hd + 18 * B * T * C * C
    transcend = B * H * T * T + B * T * 4 * C + 4 * B * T
    # weights are grid-resident -> counted once, not per batch element
    bytes_accessed = 2 * B * T * C * 4 + 3 * B * T * C * 2 + w_bytes
    return pl.pallas_call(
        functools.partial(attn_mlp_kernel, eps, tq),
        grid=grid,
        in_specs=in_specs,
        out_specs=o_spec,
        out_shape=jax.ShapeDtypeStruct((B, T, C), jnp.float32),
        compiler_params=_compiler_params(("parallel", "parallel"), blk_bytes),
        cost_estimate=pl.CostEstimate(flops=int(flops),
                                      transcendentals=int(transcend),
                                      bytes_accessed=int(bytes_accessed)),
    )(x, q, k, v, *p)


def lm_head(x, w, b):
    B, T, C = x.shape
    Vp = w.shape[1]                               # already padded to %128 == 0
    x = x.astype(jnp.bfloat16)                    # halve repeated HBM reads of x
    tt = _pick_tile(T, 512, 8)
    tv = _pick_tile(Vp, 2048, 128)                # guaranteed multiple of 128
    grid = (B, Vp // tv, T // tt)                 # seq innermost: W tile resident
    in_specs = [
        pl.BlockSpec((1, tt, C), lambda bb, vi, t: (bb, t, 0)),
        pl.BlockSpec((C, tv), lambda bb, vi, t: (0, vi)),
        pl.BlockSpec((1, tv), lambda bb, vi, t: (0, vi)),
    ]
    o_spec = pl.BlockSpec((1, tt, tv), lambda bb, vi, t: (bb, t, vi))
    blk_bytes = 2 * tt * C * 2 + 2 * C * tv * 2 + tv * 4 + 2 * tt * tv * 4
    flops = 2 * B * T * C * Vp
    bytes_accessed = B * T * C * 2 * (Vp // tv) + C * Vp * 2 + B * T * Vp * 4
    return pl.pallas_call(
        lm_head_kernel,
        grid=grid,
        in_specs=in_specs,
        out_specs=o_spec,
        out_shape=jax.ShapeDtypeStruct((B, T, Vp), jnp.float32),
        compiler_params=_compiler_params(("parallel", "parallel", "arbitrary"),
                                         blk_bytes),
        cost_estimate=pl.CostEstimate(flops=int(flops), transcendentals=0,
                                      bytes_accessed=int(bytes_accessed)),
    )(x, w, b)


# ---------------------------------------------------------------------------
# parameter prep (fused bf16 QKV weight, padded LM head)
# ---------------------------------------------------------------------------
def prepare_params(params, n_heads):
    del n_heads  # head split happens in-kernel; no weight reshaping needed
    blocks = []
    for blk in params["blocks"]:
        (ln1g, ln1b, wq, bq, wk, bk_, wv, bv, wp, bp,
         ln2g, ln2b, w1, b1, w2, b2) = blk
        wqkv = jnp.concatenate([wq, wk, wv], axis=1).astype(jnp.bfloat16)  # (C,3C)
        bqkv = jnp.concatenate([bq, bk_, bv], axis=1)                      # (1,3C)
        qkv_p = (ln1g, ln1b, wqkv, bqkv)
        mlp_p = (wp.astype(jnp.bfloat16), bp, ln2g, ln2b,
                 w1.astype(jnp.bfloat16), b1,
                 w2.astype(jnp.bfloat16), b2)
        blocks.append((qkv_p, mlp_p))
    V = params["head_w"].shape[1]
    Vp = ((V + 127) // 128) * 128                # pad vocab -> lane-dense tiles
    head_w = jnp.pad(params["head_w"], ((0, 0), (0, Vp - V))).astype(jnp.bfloat16)
    head_b = jnp.pad(params["head_b"], ((0, 0), (0, Vp - V)))
    return {
        "embedding": params["embedding"],
        "positional": params["positional"],
        "blocks": blocks,
        "head_w": head_w,
        "head_b": head_b,
    }


# ---------------------------------------------------------------------------
# full forward
# ---------------------------------------------------------------------------
@functools.partial(jax.jit, static_argnums=(2, 3))
def gpt_forward(tokens, params, n_heads, eps):
    V = params["head_w"].shape[1]
    prep = prepare_params(params, n_heads)
    B, T = tokens.shape
    C = prep["embedding"].shape[1]
    hd = C // n_heads
    scale = 1.0 / math.sqrt(hd)
    tq = _attn_tile(T, C, n_heads, hd, _vmem_cap())

    # glue: embedding gather + positional add stay in plain JAX
    x = jnp.take(prep["embedding"], tokens, axis=0) + prep["positional"][:, :T, :]

    for qkv_p, mlp_p in prep["blocks"]:
        # q/k/v come out of the kernel already head-split as (B, H, T, hd) bf16
        q, k, v = qkv_project(x, qkv_p, eps, scale, tq, n_heads)
        x = attn_mlp(x, q, k, v, mlp_p, eps, tq)

    logits = lm_head(x, prep["head_w"], prep["head_b"])
    return logits[:, :, :V]                      # drop padded vocab columns


# ---------------------------------------------------------------------------
# pure-JAX f32 reference (same math, no Pallas) for a correctness sanity check
# ---------------------------------------------------------------------------
def gpt_reference(tokens, params, n_heads, eps):
    B, T = tokens.shape
    x = jnp.take(params["embedding"], tokens, axis=0)
    x = x + params["positional"][:, :T, :]
    C = x.shape[-1]
    hd = C // n_heads
    causal = jnp.tril(jnp.ones((T, T), dtype=bool))
    for blk in params["blocks"]:
        (ln1g, ln1b, wq, bq, wk, bk_, wv, bv, wp, bp,
         ln2g, ln2b, w1, b1, w2, b2) = blk
        xn1 = _layernorm(x, ln1g, ln1b, eps)
        q = xn1 @ wq + bq
        k = xn1 @ wk + bk_
        v = xn1 @ wv + bv
        q = q.reshape(B, T, n_heads, hd).transpose(0, 2, 1, 3)
        k = k.reshape(B, T, n_heads, hd).transpose(0, 2, 1, 3)
        v = v.reshape(B, T, n_heads, hd).transpose(0, 2, 1, 3)
        att = (q @ jnp.swapaxes(k, -2, -1)) / math.sqrt(hd)
        att = jnp.where(causal[None, None], att, -jnp.inf)
        att = jax.nn.softmax(att, axis=-1)
        y = (att @ v).transpose(0, 2, 1, 3).reshape(B, T, C)
        x = x + (y @ wp + bp)
        xn2 = _layernorm(x, ln2g, ln2b, eps)
        x = x + (_gelu_exact(xn2 @ w1 + b1) @ w2 + b2)
    return x @ params["head_w"] + params["head_b"]


# ---------------------------------------------------------------------------
# deterministic parameter init
# ---------------------------------------------------------------------------
def init_params(key, vocab_len, seq_len, embed_dim, n_blocks):
    keys = jax.random.split(key, 2 + n_blocks)
    C = embed_dim

    def lin(k, fan_in, fan_out):
        kw, kb = jax.random.split(k)
        w = jax.random.normal(kw, (fan_in, fan_out), jnp.float32) * 0.02
        b = jax.random.normal(kb, (1, fan_out), jnp.float32) * 0.02
        return w, b

    blocks = []
    for i in range(n_blocks):
        bk = jax.random.split(keys[2 + i], 6)
        wq, bq = lin(bk[0], C, C)
        wk, bkb = lin(bk[1], C, C)
        wv, bv = lin(bk[2], C, C)
        wp, bp = lin(bk[3], C, C)
        w1, b1 = lin(bk[4], C, 4 * C)
        w2, b2 = lin(bk[5], 4 * C, C)
        ln1g = jnp.ones((1, C), jnp.float32)
        ln1b = jnp.zeros((1, C), jnp.float32)
        ln2g = jnp.ones((1, C), jnp.float32)
        ln2b = jnp.zeros((1, C), jnp.float32)
        blocks.append((ln1g, ln1b, wq, bq, wk, bkb, wv, bv, wp, bp,
                       ln2g, ln2b, w1, b1, w2, b2))

    emb = jax.random.normal(keys[0], (vocab_len, C), jnp.float32) * 0.02
    head_w, head_b = lin(keys[1], C, vocab_len)
    return {
        "embedding": emb,
        "positional": jnp.zeros((1, seq_len, C), jnp.float32),  # torch init = zeros
        "blocks": blocks,
        "head_w": head_w,
        "head_b": head_b,
    }


# ---------------------------------------------------------------------------
if __name__ == "__main__":
    # small config consistent with the module
    batch, seq_len, embed_dim, n_heads, n_blocks, vocab_len = 2, 8, 32, 4, 2, 64
    eps = float(embed_dim)  # reproduces nn.LayerNorm(embed_dim, embed_dim) quirk

    root = jax.random.PRNGKey(0)
    k_param, k_tok = jax.random.split(root)
    params = init_params(k_param, vocab_len, seq_len, embed_dim, n_blocks)
    tokens = jax.random.randint(k_tok, (batch, seq_len), 0, vocab_len, dtype=jnp.int32)

    logits = gpt_forward(tokens, params, n_heads, eps)
    logits = jax.block_until_ready(logits)

    ref = gpt_reference(tokens, params, n_heads, eps)
    assert logits.shape == (batch, seq_len, vocab_len)
    # matmul operands are bf16 and the softmax uses the approximate EUP
    # reciprocal -> relaxed tolerance vs the fp32 reference.
    assert jnp.allclose(logits, ref, atol=5e-3, rtol=5e-2), "mismatch vs JAX reference"

    print("KERNEL_OK")
</pallas_src>

<mosaic_0001>
module attributes {stable_mosaic.version = 11 : i64} {
  func.func @attn_mlp_kernel(%arg0: i32, %arg1: i32, %arg2: memref<1x8x32xf32, #tpu.memory_space<vmem>>, %arg3: memref<1x4x8x8xbf16, #tpu.memory_space<vmem>>, %arg4: memref<1x4x8x8xbf16, #tpu.memory_space<vmem>>, %arg5: memref<1x4x8x8xbf16, #tpu.memory_space<vmem>>, %arg6: memref<32x32xbf16, #tpu.memory_space<vmem>>, %arg7: memref<1x32xf32, #tpu.memory_space<vmem>>, %arg8: memref<1x32xf32, #tpu.memory_space<vmem>>, %arg9: memref<1x32xf32, #tpu.memory_space<vmem>>, %arg10: memref<32x128xbf16, #tpu.memory_space<vmem>>, %arg11: memref<1x128xf32, #tpu.memory_space<vmem>>, %arg12: memref<128x32xbf16, #tpu.memory_space<vmem>>, %arg13: memref<1x32xf32, #tpu.memory_space<vmem>>, %arg14: memref<1x8x32xf32, #tpu.memory_space<vmem>>) attributes {dimension_semantics = [#tpu.dimension_semantics<parallel>, #tpu.dimension_semantics<parallel>], iteration_bounds = array<i64: 2, 1>, scalar_prefetch = 0 : i64, scratch_operands = 0 : i64, tpu.core_type = #tpu.core_type<tc>, window_params = [{transform_indices = @transform_0, window_bounds = array<i64: 1, 8, 32>}, {transform_indices = @transform_1, window_bounds = array<i64: 1, 4, 8, 8>}, {pipeline_mode = #tpu.pipeline_mode<synchronous>, transform_indices = @transform_2, window_bounds = array<i64: 1, 4, 8, 8>}, {pipeline_mode = #tpu.pipeline_mode<synchronous>, transform_indices = @transform_3, window_bounds = array<i64: 1, 4, 8, 8>}, {pipeline_mode = #tpu.pipeline_mode<synchronous>, transform_indices = @transform_4, window_bounds = array<i64: 32, 32>}, {pipeline_mode = #tpu.pipeline_mode<synchronous>, transform_indices = @transform_5, window_bounds = array<i64: 1, 32>}, {pipeline_mode = #tpu.pipeline_mode<synchronous>, transform_indices = @transform_6, window_bounds = array<i64: 1, 32>}, {pipeline_mode = #tpu.pipeline_mode<synchronous>, transform_indices = @transform_7, window_bounds = array<i64: 1, 32>}, {pipeline_mode = #tpu.pipeline_mode<synchronous>, transform_indices = @transform_8, window_bounds = array<i64: 32, 128>}, {pipeline_mode = #tpu.pipeline_mode<synchronous>, transform_indices = @transform_9, window_bounds = array<i64: 1, 128>}, {pipeline_mode = #tpu.pipeline_mode<synchronous>, transform_indices = @transform_10, window_bounds = array<i64: 128, 32>}, {pipeline_mode = #tpu.pipeline_mode<synchronous>, transform_indices = @transform_11, window_bounds = array<i64: 1, 32>}, {transform_indices = @transform_12, window_bounds = array<i64: 1, 8, 32>}]} {
    %c0 = arith.constant 0 : index
    %c0_0 = arith.constant 0 : index
    %c0_1 = arith.constant 0 : index
    %0 = vector.load %arg2[%c0, %c0_0, %c0_1] : memref<1x8x32xf32, #tpu.memory_space<vmem>>, vector<1x8x32xf32>
    %1 = vector.shape_cast %0 : vector<1x8x32xf32> to vector<8x32xf32>
    %c0_2 = arith.constant 0 : index
    %c0_3 = arith.constant 0 : index
    %c0_4 = arith.constant 0 : index
    %c0_5 = arith.constant 0 : index
    %2 = vector.load %arg3[%c0_2, %c0_3, %c0_4, %c0_5] : memref<1x4x8x8xbf16, #tpu.memory_space<vmem>>, vector<1x4x8x8xbf16>
    %3 = vector.shape_cast %2 : vector<1x4x8x8xbf16> to vector<4x8x8xbf16>
    %c0_6 = arith.constant 0 : index
    %c0_7 = arith.constant 0 : index
    %c0_8 = arith.constant 0 : index
    %c0_9 = arith.constant 0 : index
    %4 = vector.load %arg4[%c0_6, %c0_7, %c0_8, %c0_9] : memref<1x4x8x8xbf16, #tpu.memory_space<vmem>>, vector<1x4x8x8xbf16>
    %5 = vector.shape_cast %4 : vector<1x4x8x8xbf16> to vector<4x8x8xbf16>
    %c0_10 = arith.constant 0 : index
    %c0_11 = arith.constant 0 : index
    %c0_12 = arith.constant 0 : index
    %c0_13 = arith.constant 0 : index
    %6 = vector.load %arg5[%c0_10, %c0_11, %c0_12, %c0_13] : memref<1x4x8x8xbf16, #tpu.memory_space<vmem>>, vector<1x4x8x8xbf16>
    %7 = vector.shape_cast %6 : vector<1x4x8x8xbf16> to vector<4x8x8xbf16>
    %c8_i32 = arith.constant 8 : i32
    %8 = arith.muli %arg1, %c8_i32 : i32
    %9 = tpu.iota {dimensions = array<i32: 0>} : vector<8x8xi32>
    %10 = vector.broadcast %8 : i32 to vector<8x8xi32>
    %11 = arith.addi %9, %10 : vector<8x8xi32>
    %12 = tpu.iota {dimensions = array<i32: 1>} : vector<8x8xi32>
    %13 = arith.cmpi sge, %11, %12 : vector<8x8xi32>
    %cst = arith.constant 0.000000e+00 : f32
    %cst_14 = arith.constant -1.000000e+30 : f32
    %14 = vector.broadcast %cst : f32 to vector<8x8xf32>
    %15 = vector.broadcast %cst_14 : f32 to vector<8x8xf32>
    %16 = arith.select %13, %14, %15 : vector<8x8xi1>, vector<8x8xf32>
    "tpu.trace_start"() <{level = 10 : i32, message = "hqd,hkd->hqk"}> : () -> ()
    %cst_15 = arith.constant dense<0.000000e+00> : vector<4x8x8xf32>
    %17 = tpu.matmul %3, %5, %cst_15 {dimension_numbers = #tpu.dot_dimension_numbers<[2], [2], [1], [1], [0, 0, 0, 1, 1, 1], [0], [0]>} : vector<4x8x8xbf16>, vector<4x8x8xbf16>, vector<4x8x8xf32> -> vector<4x8x8xf32>
    "tpu.trace_stop"() : () -> ()
    %18 = vector.shape_cast %16 : vector<8x8xf32> to vector<1x8x8xf32>
    %19 = vector.broadcast %18 : vector<1x8x8xf32> to vector<4x8x8xf32>
    %20 = arith.addf %17, %19 : vector<4x8x8xf32>
    %cst_16 = arith.constant dense<0xFF800000> : vector<4x8xf32>
    %21 = vector.multi_reduction <maximumf>, %20, %cst_16 [2] : vector<4x8x8xf32> to vector<4x8xf32>
    %22 = vector.shape_cast %21 : vector<4x8xf32> to vector<4x8x1xf32>
    %23 = vector.broadcast %22 : vector<4x8x1xf32> to vector<4x8x8xf32>
    %24 = arith.subf %20, %23 : vector<4x8x8xf32>
    %25 = math.exp %24 : vector<4x8x8xf32>
    %cst_17 = arith.constant dense<0.000000e+00> : vector<4x8xf32>
    %26 = vector.multi_reduction <add>, %25, %cst_17 [2] : vector<4x8x8xf32> to vector<4x8xf32>
    %27 = vector.shape_cast %26 : vector<4x8xf32> to vector<4x8x1xf32>
    %28 = tpu.reciprocal %27 {approx = true} : vector<4x8x1xf32> -> vector<4x8x1xf32>
    %29 = vector.broadcast %28 : vector<4x8x1xf32> to vector<4x8x8xf32>
    %30 = arith.mulf %25, %29 : vector<4x8x8xf32>
    %31 = arith.truncf %30 : vector<4x8x8xf32> to vector<4x8x8xbf16>
    "tpu.trace_start"() <{level = 10 : i32, message = "hqk,hkd->hqd"}> : () -> ()
    %cst_18 = arith.constant dense<0.000000e+00> : vector<4x8x8xf32>
    %32 = tpu.matmul %31, %7, %cst_18 {dimension_numbers = #tpu.dot_dimension_numbers<[2], [1], [1], [2], [0, 0, 0, 1, 1, 2], [0], [0]>} : vector<4x8x8xbf16>, vector<4x8x8xbf16>, vector<4x8x8xf32> -> vector<4x8x8xf32>
    "tpu.trace_stop"() : () -> ()
    %33 = vector.extract_strided_slice %32 {offsets = [0, 0, 0], sizes = [1, 8, 8], strides = [1, 1, 1]} : vector<4x8x8xf32> to vector<1x8x8xf32>
    %34 = vector.shape_cast %33 : vector<1x8x8xf32> to vector<8x8xf32>
    %35 = vector.extract_strided_slice %32 {offsets = [1, 0, 0], sizes = [1, 8, 8], strides = [1, 1, 1]} : vector<4x8x8xf32> to vector<1x8x8xf32>
    %36 = vector.shape_cast %35 : vector<1x8x8xf32> to vector<8x8xf32>
    %37 = vector.extract_strided_slice %32 {offsets = [2, 0, 0], sizes = [1, 8, 8], strides = [1, 1, 1]} : vector<4x8x8xf32> to vector<1x8x8xf32>
    %38 = vector.shape_cast %37 : vector<1x8x8xf32> to vector<8x8xf32>
    %39 = vector.extract_strided_slice %32 {offsets = [3, 0, 0], sizes = [1, 8, 8], strides = [1, 1, 1]} : vector<4x8x8xf32> to vector<1x8x8xf32>
    %40 = vector.shape_cast %39 : vector<1x8x8xf32> to vector<8x8xf32>
    %41 = tpu.concatenate %34, %36, %38, %40 in 1 : vector<8x8xf32>, vector<8x8xf32>, vector<8x8xf32>, vector<8x8xf32> -> vector<8x32xf32>
    %42 = arith.truncf %41 : vector<8x32xf32> to vector<8x32xbf16>
    %c0_19 = arith.constant 0 : index
    %c0_20 = arith.constant 0 : index
    %43 = vector.load %arg6[%c0_19, %c0_20] : memref<32x32xbf16, #tpu.memory_space<vmem>>, vector<32x32xbf16>
    %cst_21 = arith.constant dense<0.000000e+00> : vector<8x32xf32>
    %44 = tpu.matmul %42, %43, %cst_21 {dimension_numbers = #tpu.dot_dimension_numbers<[1], [0], [0], [1], [0, 0, 1, 1], [], []>} : vector<8x32xbf16>, vector<32x32xbf16>, vector<8x32xf32> -> vector<8x32xf32>
    %c0_22 = arith.constant 0 : index
    %c0_23 = arith.constant 0 : index
    %45 = vector.load %arg7[%c0_22, %c0_23] : memref<1x32xf32, #tpu.memory_space<vmem>>, vector<1x32xf32>
    %46 = vector.broadcast %45 : vector<1x32xf32> to vector<8x32xf32>
    %47 = arith.addf %44, %46 : vector<8x32xf32>
    %48 = arith.addf %1, %47 : vector<8x32xf32>
    %c0_24 = arith.constant 0 : index
    %c0_25 = arith.constant 0 : index
    %49 = vector.load %arg8[%c0_24, %c0_25] : memref<1x32xf32, #tpu.memory_space<vmem>>, vector<1x32xf32>
    %c0_26 = arith.constant 0 : index
    %c0_27 = arith.constant 0 : index
    %50 = vector.load %arg9[%c0_26, %c0_27] : memref<1x32xf32, #tpu.memory_space<vmem>>, vector<1x32xf32>
    %cst_28 = arith.constant dense<0.000000e+00> : vector<8xf32>
    %51 = vector.multi_reduction <add>, %48, %cst_28 [1] : vector<8x32xf32> to vector<8xf32>
    %52 = vector.shape_cast %51 : vector<8xf32> to vector<8x1xf32>
    %cst_29 = arith.constant 3.200000e+01 : f32
    %53 = vector.broadcast %cst_29 : f32 to vector<8x1xf32>
    %54 = arith.divf %52, %53 : vector<8x1xf32>
    %55 = vector.broadcast %54 : vector<8x1xf32> to vector<8x32xf32>
    %56 = arith.subf %48, %55 : vector<8x32xf32>
    %57 = arith.mulf %56, %56 : vector<8x32xf32>
    %cst_30 = arith.constant dense<0.000000e+00> : vector<8xf32>
    %58 = vector.multi_reduction <add>, %57, %cst_30 [1] : vector<8x32xf32> to vector<8xf32>
    %59 = vector.shape_cast %58 : vector<8xf32> to vector<8x1xf32>
    %cst_31 = arith.constant 3.200000e+01 : f32
    %60 = vector.broadcast %cst_31 : f32 to vector<8x1xf32>
    %61 = arith.divf %59, %60 : vector<8x1xf32>
    %62 = vector.broadcast %54 : vector<8x1xf32> to vector<8x32xf32>
    %63 = arith.subf %48, %62 : vector<8x32xf32>
    %cst_32 = arith.constant 3.200000e+01 : f32
    %64 = vector.broadcast %cst_32 : f32 to vector<8x1xf32>
    %65 = arith.addf %61, %64 : vector<8x1xf32>
    %66 = math.rsqrt %65 : vector<8x1xf32>
    %67 = vector.broadcast %66 : vector<8x1xf32> to vector<8x32xf32>
    %68 = arith.mulf %63, %67 : vector<8x32xf32>
    %69 = vector.broadcast %49 : vector<1x32xf32> to vector<8x32xf32>
    %70 = arith.mulf %68, %69 : vector<8x32xf32>
    %71 = vector.broadcast %50 : vector<1x32xf32> to vector<8x32xf32>
    %72 = arith.addf %70, %71 : vector<8x32xf32>
    %73 = arith.truncf %72 : vector<8x32xf32> to vector<8x32xbf16>
    %c0_33 = arith.constant 0 : index
    %c0_34 = arith.constant 0 : index
    %74 = vector.load %arg10[%c0_33, %c0_34] : memref<32x128xbf16, #tpu.memory_space<vmem>>, vector<32x128xbf16>
    %cst_35 = arith.constant dense<0.000000e+00> : vector<8x128xf32>
    %75 = tpu.matmul %73, %74, %cst_35 {dimension_numbers = #tpu.dot_dimension_numbers<[1], [0], [0], [1], [0, 0, 1, 1], [], []>} : vector<8x32xbf16>, vector<32x128xbf16>, vector<8x128xf32> -> vector<8x128xf32>
    %c0_36 = arith.constant 0 : index
    %c0_37 = arith.constant 0 : index
    %76 = vector.load %arg11[%c0_36, %c0_37] : memref<1x128xf32, #tpu.memory_space<vmem>>, vector<1x128xf32>
    %77 = vector.broadcast %76 : vector<1x128xf32> to vector<8x128xf32>
    %78 = arith.addf %75, %77 : vector<8x128xf32>
    %cst_38 = arith.constant 5.000000e-01 : f32
    %79 = vector.broadcast %cst_38 : f32 to vector<8x128xf32>
    %80 = arith.mulf %79, %78 : vector<8x128xf32>
    %cst_39 = arith.constant 0.707106769 : f32
    %81 = vector.broadcast %cst_39 : f32 to vector<8x128xf32>
    %82 = arith.mulf %78, %81 : vector<8x128xf32>
    %83 = math.erf %82 : vector<8x128xf32>
    %cst_40 = arith.constant 1.000000e+00 : f32
    %84 = vector.broadcast %cst_40 : f32 to vector<8x128xf32>
    %85 = arith.addf %84, %83 : vector<8x128xf32>
    %86 = arith.mulf %80, %85 : vector<8x128xf32>
    %87 = arith.truncf %86 : vector<8x128xf32> to vector<8x128xbf16>
    %c0_41 = arith.constant 0 : index
    %c0_42 = arith.constant 0 : index
    %88 = vector.load %arg12[%c0_41, %c0_42] : memref<128x32xbf16, #tpu.memory_space<vmem>>, vector<128x32xbf16>
    %cst_43 = arith.constant dense<0.000000e+00> : vector<8x32xf32>
    %89 = tpu.matmul %87, %88, %cst_43 {dimension_numbers = #tpu.dot_dimension_numbers<[1], [0], [0], [1], [0, 0, 1, 1], [], []>} : vector<8x128xbf16>, vector<128x32xbf16>, vector<8x32xf32> -> vector<8x32xf32>
    %c0_44 = arith.constant 0 : index
    %c0_45 = arith.constant 0 : index
    %90 = vector.load %arg13[%c0_44, %c0_45] : memref<1x32xf32, #tpu.memory_space<vmem>>, vector<1x32xf32>
    %91 = vector.broadcast %90 : vector<1x32xf32> to vector<8x32xf32>
    %92 = arith.addf %89, %91 : vector<8x32xf32>
    %93 = arith.addf %48, %92 : vector<8x32xf32>
    %c0_46 = arith.constant 0 : index
    %c0_47 = arith.constant 0 : index
    %c0_48 = arith.constant 0 : index
    %94 = vector.load %arg14[%c0_46, %c0_47, %c0_48] : memref<1x8x32xf32, #tpu.memory_space<vmem>>, vector<1x8x32xf32>
    %95 = vector.shape_cast %94 : vector<1x8x32xf32> to vector<8x32xf32>
    %96 = vector.shape_cast %93 : vector<8x32xf32> to vector<1x8x32xf32>
    tpu.vector_store %arg14[%c0_46, %c0_47, %c0_48], %96 {strides = array<i32>} : memref<1x8x32xf32, #tpu.memory_space<vmem>>, vector<1x8x32xf32>,
    return
  }
  func.func @transform_0(%arg0: i32, %arg1: i32) -> (i32, i32, i32) {
    %c0_i32 = arith.constant 0 : i32
    %c0_i32_0 = arith.constant 0 : i32
    return %arg0, %arg1, %c0_i32 : i32, i32, i32
  }
  func.func @transform_1(%arg0: i32, %arg1: i32) -> (i32, i32, i32, i32) {
    %c0_i32 = arith.constant 0 : i32
    %c0_i32_0 = arith.constant 0 : i32
    %c0_i32_1 = arith.constant 0 : i32
    return %arg0, %c0_i32, %arg1, %c0_i32_0 : i32, i32, i32, i32
  }
  func.func @transform_2(%arg0: i32, %arg1: i32) -> (i32, i32, i32, i32) {
    %c0_i32 = arith.constant 0 : i32
    %c0_i32_0 = arith.constant 0 : i32
    %c0_i32_1 = arith.constant 0 : i32
    %c0_i32_2 = arith.constant 0 : i32
    return %arg0, %c0_i32, %c0_i32_0, %c0_i32_1 : i32, i32, i32, i32
  }
  func.func @transform_3(%arg0: i32, %arg1: i32) -> (i32, i32, i32, i32) {
    %c0_i32 = arith.constant 0 : i32
    %c0_i32_0 = arith.constant 0 : i32
    %c0_i32_1 = arith.constant 0 : i32
    %c0_i32_2 = arith.constant 0 : i32
    return %arg0, %c0_i32, %c0_i32_0, %c0_i32_1 : i32, i32, i32, i32
  }
  func.func @transform_4(%arg0: i32, %arg1: i32) -> (i32, i32) {
    %c0_i32 = arith.constant 0 : i32
    %c0_i32_0 = arith.constant 0 : i32
    %c0_i32_1 = arith.constant 0 : i32
    return %c0_i32, %c0_i32_0 : i32, i32
  }
  func.func @transform_5(%arg0: i32, %arg1: i32) -> (i32, i32) {
    %c0_i32 = arith.constant 0 : i32
    %c0_i32_0 = arith.constant 0 : i32
    %c0_i32_1 = arith.constant 0 : i32
    return %c0_i32, %c0_i32_0 : i32, i32
  }
  func.func @transform_6(%arg0: i32, %arg1: i32) -> (i32, i32) {
    %c0_i32 = arith.constant 0 : i32
    %c0_i32_0 = arith.constant 0 : i32
    %c0_i32_1 = arith.constant 0 : i32
    return %c0_i32, %c0_i32_0 : i32, i32
  }
  func.func @transform_7(%arg0: i32, %arg1: i32) -> (i32, i32) {
    %c0_i32 = arith.constant 0 : i32
    %c0_i32_0 = arith.constant 0 : i32
    %c0_i32_1 = arith.constant 0 : i32
    return %c0_i32, %c0_i32_0 : i32, i32
  }
  func.func @transform_8(%arg0: i32, %arg1: i32) -> (i32, i32) {
    %c0_i32 = arith.constant 0 : i32
    %c0_i32_0 = arith.constant 0 : i32
    %c0_i32_1 = arith.constant 0 : i32
    return %c0_i32, %c0_i32_0 : i32, i32
  }
  func.func @transform_9(%arg0: i32, %arg1: i32) -> (i32, i32) {
    %c0_i32 = arith.constant 0 : i32
    %c0_i32_0 = arith.constant 0 : i32
    %c0_i32_1 = arith.constant 0 : i32
    return %c0_i32, %c0_i32_0 : i32, i32
  }
  func.func @transform_10(%arg0: i32, %arg1: i32) -> (i32, i32) {
    %c0_i32 = arith.constant 0 : i32
    %c0_i32_0 = arith.constant 0 : i32
    %c0_i32_1 = arith.constant 0 : i32
    return %c0_i32, %c0_i32_0 : i32, i32
  }
  func.func @transform_11(%arg0: i32, %arg1: i32) -> (i32, i32) {
    %c0_i32 = arith.constant 0 : i32
    %c0_i32_0 = arith.constant 0 : i32
    %c0_i32_1 = arith.constant 0 : i32
    return %c0_i32, %c0_i32_0 : i32, i32
  }
  func.func @transform_12(%arg0: i32, %arg1: i32) -> (i32, i32, i32) {
    %c0_i32 = arith.constant 0 : i32
    %c0_i32_0 = arith.constant 0 : i32
    return %arg0, %arg1, %c0_i32 : i32, i32, i32
  }
}

module attributes {stable_mosaic.version = 11 : i64} {
  func.func @lm_head_kernel(%arg0: i32, %arg1: i32, %arg2: i32, %arg3: memref<1x8x32xbf16, #tpu.memory_space<vmem>>, %arg4: memref<32x128xbf16, #tpu.memory_space<vmem>>, %arg5: memref<1x128xf32, #tpu.memory_space<vmem>>, %arg6: memref<1x8x128xf32, #tpu.memory_space<vmem>>) attributes {dimension_semantics = [#tpu.dimension_semantics<parallel>, #tpu.dimension_semantics<parallel>, #tpu.dimension_semantics<arbitrary>], iteration_bounds = array<i64: 2, 1, 1>, scalar_prefetch = 0 : i64, scratch_operands = 0 : i64, tpu.core_type = #tpu.core_type<tc>, window_params = [{transform_indices = @transform_0, window_bounds = array<i64: 1, 8, 32>}, {transform_indices = @transform_1, window_bounds = array<i64: 32, 128>}, {transform_indices = @transform_2, window_bounds = array<i64: 1, 128>}, {transform_indices = @transform_3, window_bounds = array<i64: 1, 8, 128>}]} {
    %c0 = arith.constant 0 : index
    %c0_0 = arith.constant 0 : index
    %c0_1 = arith.constant 0 : index
    %0 = vector.load %arg3[%c0, %c0_0, %c0_1] : memref<1x8x32xbf16, #tpu.memory_space<vmem>>, vector<1x8x32xbf16>
    %1 = vector.shape_cast %0 : vector<1x8x32xbf16> to vector<8x32xbf16>
    %c0_2 = arith.constant 0 : index
    %c0_3 = arith.constant 0 : index
    %2 = vector.load %arg4[%c0_2, %c0_3] : memref<32x128xbf16, #tpu.memory_space<vmem>>, vector<32x128xbf16>
    %cst = arith.constant dense<0.000000e+00> : vector<8x128xf32>
    %3 = tpu.matmul %1, %2, %cst {dimension_numbers = #tpu.dot_dimension_numbers<[1], [0], [0], [1], [0, 0, 1, 1], [], []>} : vector<8x32xbf16>, vector<32x128xbf16>, vector<8x128xf32> -> vector<8x128xf32>
    %c0_4 = arith.constant 0 : index
    %c0_5 = arith.constant 0 : index
    %4 = vector.load %arg5[%c0_4, %c0_5] : memref<1x128xf32, #tpu.memory_space<vmem>>, vector<1x128xf32>
    %5 = vector.broadcast %4 : vector<1x128xf32> to vector<8x128xf32>
    %6 = arith.addf %3, %5 : vector<8x128xf32>
    %c0_6 = arith.constant 0 : index
    %c0_7 = arith.constant 0 : index
    %c0_8 = arith.constant 0 : index
    %7 = vector.load %arg6[%c0_6, %c0_7, %c0_8] : memref<1x8x128xf32, #tpu.memory_space<vmem>>, vector<1x8x128xf32>
    %8 = vector.shape_cast %7 : vector<1x8x128xf32> to vector<8x128xf32>
    %9 = vector.shape_cast %6 : vector<8x128xf32> to vector<1x8x128xf32>
    tpu.vector_store %arg6[%c0_6, %c0_7, %c0_8], %9 {strides = array<i32>} : memref<1x8x128xf32, #tpu.memory_space<vmem>>, vector<1x8x128xf32>,
    return
  }
  func.func @transform_0(%arg0: i32, %arg1: i32, %arg2: i32) -> (i32, i32, i32) {
    %c0_i32 = arith.constant 0 : i32
    %c0_i32_0 = arith.constant 0 : i32
    return %arg0, %arg2, %c0_i32 : i32, i32, i32
  }
  func.func @transform_1(%arg0: i32, %arg1: i32, %arg2: i32) -> (i32, i32) {
    %c0_i32 = arith.constant 0 : i32
    %c0_i32_0 = arith.constant 0 : i32
    return %c0_i32, %arg1 : i32, i32
  }
  func.func @transform_2(%arg0: i32, %arg1: i32, %arg2: i32) -> (i32, i32) {
    %c0_i32 = arith.constant 0 : i32
    %c0_i32_0 = arith.constant 0 : i32
    return %c0_i32, %arg1 : i32, i32
  }
  func.func @transform_3(%arg0: i32, %arg1: i32, %arg2: i32) -> (i32, i32, i32) {
    %c0_i32 = arith.constant 0 : i32
    return %arg0, %arg2, %arg1 : i32, i32, i32
  }
}

module attributes {stable_mosaic.version = 11 : i64} {
  func.func @qkv_kernel(%arg0: i32, %arg1: i32, %arg2: memref<1x8x32xf32, #tpu.memory_space<vmem>>, %arg3: memref<1x32xf32, #tpu.memory_space<vmem>>, %arg4: memref<1x32xf32, #tpu.memory_space<vmem>>, %arg5: memref<32x96xbf16, #tpu.memory_space<vmem>>, %arg6: memref<1x96xf32, #tpu.memory_space<vmem>>, %arg7: memref<1x4x8x8xbf16, #tpu.memory_space<vmem>>, %arg8: memref<1x4x8x8xbf16, #tpu.memory_space<vmem>>, %arg9: memref<1x4x8x8xbf16, #tpu.memory_space<vmem>>) attributes {dimension_semantics = [#tpu.dimension_semantics<parallel>, #tpu.dimension_semantics<parallel>], iteration_bounds = array<i64: 2, 1>, scalar_prefetch = 0 : i64, scratch_operands = 0 : i64, tpu.core_type = #tpu.core_type<tc>, window_params = [{transform_indices = @transform_0, window_bounds = array<i64: 1, 8, 32>}, {pipeline_mode = #tpu.pipeline_mode<synchronous>, transform_indices = @transform_1, window_bounds = array<i64: 1, 32>}, {pipeline_mode = #tpu.pipeline_mode<synchronous>, transform_indices = @transform_2, window_bounds = array<i64: 1, 32>}, {pipeline_mode = #tpu.pipeline_mode<synchronous>, transform_indices = @transform_3, window_bounds = array<i64: 32, 96>}, {pipeline_mode = #tpu.pipeline_mode<synchronous>, transform_indices = @transform_4, window_bounds = array<i64: 1, 96>}, {transform_indices = @transform_5, window_bounds = array<i64: 1, 4, 8, 8>}, {transform_indices = @transform_6, window_bounds = array<i64: 1, 4, 8, 8>}, {transform_indices = @transform_7, window_bounds = array<i64: 1, 4, 8, 8>}]} {
    %c0 = arith.constant 0 : index
    %c0_0 = arith.constant 0 : index
    %c0_1 = arith.constant 0 : index
    %0 = vector.load %arg2[%c0, %c0_0, %c0_1] : memref<1x8x32xf32, #tpu.memory_space<vmem>>, vector<1x8x32xf32>
    %1 = vector.shape_cast %0 : vector<1x8x32xf32> to vector<8x32xf32>
    %c0_2 = arith.constant 0 : index
    %c0_3 = arith.constant 0 : index
    %2 = vector.load %arg3[%c0_2, %c0_3] : memref<1x32xf32, #tpu.memory_space<vmem>>, vector<1x32xf32>
    %c0_4 = arith.constant 0 : index
    %c0_5 = arith.constant 0 : index
    %3 = vector.load %arg4[%c0_4, %c0_5] : memref<1x32xf32, #tpu.memory_space<vmem>>, vector<1x32xf32>
    %cst = arith.constant dense<0.000000e+00> : vector<8xf32>
    %4 = vector.multi_reduction <add>, %1, %cst [1] : vector<8x32xf32> to vector<8xf32>
    %5 = vector.shape_cast %4 : vector<8xf32> to vector<8x1xf32>
    %cst_6 = arith.constant 3.200000e+01 : f32
    %6 = vector.broadcast %cst_6 : f32 to vector<8x1xf32>
    %7 = arith.divf %5, %6 : vector<8x1xf32>
    %8 = vector.broadcast %7 : vector<8x1xf32> to vector<8x32xf32>
    %9 = arith.subf %1, %8 : vector<8x32xf32>
    %10 = arith.mulf %9, %9 : vector<8x32xf32>
    %cst_7 = arith.constant dense<0.000000e+00> : vector<8xf32>
    %11 = vector.multi_reduction <add>, %10, %cst_7 [1] : vector<8x32xf32> to vector<8xf32>
    %12 = vector.shape_cast %11 : vector<8xf32> to vector<8x1xf32>
    %cst_8 = arith.constant 3.200000e+01 : f32
    %13 = vector.broadcast %cst_8 : f32 to vector<8x1xf32>
    %14 = arith.divf %12, %13 : vector<8x1xf32>
    %15 = vector.broadcast %7 : vector<8x1xf32> to vector<8x32xf32>
    %16 = arith.subf %1, %15 : vector<8x32xf32>
    %cst_9 = arith.constant 3.200000e+01 : f32
    %17 = vector.broadcast %cst_9 : f32 to vector<8x1xf32>
    %18 = arith.addf %14, %17 : vector<8x1xf32>
    %19 = math.rsqrt %18 : vector<8x1xf32>
    %20 = vector.broadcast %19 : vector<8x1xf32> to vector<8x32xf32>
    %21 = arith.mulf %16, %20 : vector<8x32xf32>
    %22 = vector.broadcast %2 : vector<1x32xf32> to vector<8x32xf32>
    %23 = arith.mulf %21, %22 : vector<8x32xf32>
    %24 = vector.broadcast %3 : vector<1x32xf32> to vector<8x32xf32>
    %25 = arith.addf %23, %24 : vector<8x32xf32>
    %26 = arith.truncf %25 : vector<8x32xf32> to vector<8x32xbf16>
    %c0_10 = arith.constant 0 : index
    %c0_11 = arith.constant 0 : index
    %27 = vector.load %arg5[%c0_10, %c0_11] : memref<32x96xbf16, #tpu.memory_space<vmem>>, vector<32x96xbf16>
    %cst_12 = arith.constant dense<0.000000e+00> : vector<8x96xf32>
    %28 = tpu.matmul %26, %27, %cst_12 {dimension_numbers = #tpu.dot_dimension_numbers<[1], [0], [0], [1], [0, 0, 1, 1], [], []>} : vector<8x32xbf16>, vector<32x96xbf16>, vector<8x96xf32> -> vector<8x96xf32>
    %c0_13 = arith.constant 0 : index
    %c0_14 = arith.constant 0 : index
    %29 = vector.load %arg6[%c0_13, %c0_14] : memref<1x96xf32, #tpu.memory_space<vmem>>, vector<1x96xf32>
    %30 = vector.broadcast %29 : vector<1x96xf32> to vector<8x96xf32>
    %31 = arith.addf %28, %30 : vector<8x96xf32>
    %32 = vector.extract_strided_slice %31 {offsets = [0, 0], sizes = [8, 32], strides = [1, 1]} : vector<8x96xf32> to vector<8x32xf32>
    %cst_15 = arith.constant 0.353553385 : f32
    %33 = vector.broadcast %cst_15 : f32 to vector<8x32xf32>
    %34 = arith.mulf %32, %33 : vector<8x32xf32>
    %35 = vector.extract_strided_slice %31 {offsets = [0, 32], sizes = [8, 32], strides = [1, 1]} : vector<8x96xf32> to vector<8x32xf32>
    %36 = vector.extract_strided_slice %31 {offsets = [0, 64], sizes = [8, 32], strides = [1, 1]} : vector<8x96xf32> to vector<8x32xf32>
    %37 = vector.extract_strided_slice %34 {offsets = [0, 0], sizes = [8, 8], strides = [1, 1]} : vector<8x32xf32> to vector<8x8xf32>
    %38 = arith.truncf %37 : vector<8x8xf32> to vector<8x8xbf16>
    %c0_16 = arith.constant 0 : index
    %c0_17 = arith.constant 0 : index
    %c0_18 = arith.constant 0 : index
    %c0_19 = arith.constant 0 : index
    %39 = vector.load %arg7[%c0_16, %c0_17, %c0_18, %c0_19] : memref<1x4x8x8xbf16, #tpu.memory_space<vmem>>, vector<1x1x8x8xbf16>
    %40 = vector.shape_cast %39 : vector<1x1x8x8xbf16> to vector<8x8xbf16>
    %41 = vector.shape_cast %38 : vector<8x8xbf16> to vector<1x1x8x8xbf16>
    tpu.vector_store %arg7[%c0_16, %c0_17, %c0_18, %c0_19], %41 {strides = array<i32>} : memref<1x4x8x8xbf16, #tpu.memory_space<vmem>>, vector<1x1x8x8xbf16>,
    %42 = vector.extract_strided_slice %35 {offsets = [0, 0], sizes = [8, 8], strides = [1, 1]} : vector<8x32xf32> to vector<8x8xf32>
    %43 = arith.truncf %42 : vector<8x8xf32> to vector<8x8xbf16>
    %c0_20 = arith.constant 0 : index
    %c0_21 = arith.constant 0 : index
    %c0_22 = arith.constant 0 : index
    %c0_23 = arith.constant 0 : index
    %44 = vector.load %arg8[%c0_20, %c0_21, %c0_22, %c0_23] : memref<1x4x8x8xbf16, #tpu.memory_space<vmem>>, vector<1x1x8x8xbf16>
    %45 = vector.shape_cast %44 : vector<1x1x8x8xbf16> to vector<8x8xbf16>
    %46 = vector.shape_cast %43 : vector<8x8xbf16> to vector<1x1x8x8xbf16>
    tpu.vector_store %arg8[%c0_20, %c0_21, %c0_22, %c0_23], %46 {strides = array<i32>} : memref<1x4x8x8xbf16, #tpu.memory_space<vmem>>, vector<1x1x8x8xbf16>,
    %47 = vector.extract_strided_slice %36 {offsets = [0, 0], sizes = [8, 8], strides = [1, 1]} : vector<8x32xf32> to vector<8x8xf32>
    %48 = arith.truncf %47 : vector<8x8xf32> to vector<8x8xbf16>
    %c0_24 = arith.constant 0 : index
    %c0_25 = arith.constant 0 : index
    %c0_26 = arith.constant 0 : index
    %c0_27 = arith.constant 0 : index
    %49 = vector.load %arg9[%c0_24, %c0_25, %c0_26, %c0_27] : memref<1x4x8x8xbf16, #tpu.memory_space<vmem>>, vector<1x1x8x8xbf16>
    %50 = vector.shape_cast %49 : vector<1x1x8x8xbf16> to vector<8x8xbf16>
    %51 = vector.shape_cast %48 : vector<8x8xbf16> to vector<1x1x8x8xbf16>
    tpu.vector_store %arg9[%c0_24, %c0_25, %c0_26, %c0_27], %51 {strides = array<i32>} : memref<1x4x8x8xbf16, #tpu.memory_space<vmem>>, vector<1x1x8x8xbf16>,
    %52 = vector.extract_strided_slice %34 {offsets = [0, 8], sizes = [8, 8], strides = [1, 1]} : vector<8x32xf32> to vector<8x8xf32>
    %53 = arith.truncf %52 : vector<8x8xf32> to vector<8x8xbf16>
    %c0_28 = arith.constant 0 : index
    %c1 = arith.constant 1 : index
    %c0_29 = arith.constant 0 : index
    %c0_30 = arith.constant 0 : index
    %54 = vector.load %arg7[%c0_28, %c1, %c0_29, %c0_30] : memref<1x4x8x8xbf16, #tpu.memory_space<vmem>>, vector<1x1x8x8xbf16>
    %55 = vector.shape_cast %54 : vector<1x1x8x8xbf16> to vector<8x8xbf16>
    %56 = vector.shape_cast %53 : vector<8x8xbf16> to vector<1x1x8x8xbf16>
    tpu.vector_store %arg7[%c0_28, %c1, %c0_29, %c0_30], %56 {strides = array<i32>} : memref<1x4x8x8xbf16, #tpu.memory_space<vmem>>, vector<1x1x8x8xbf16>,
    %57 = vector.extract_strided_slice %35 {offsets = [0, 8], sizes = [8, 8], strides = [1, 1]} : vector<8x32xf32> to vector<8x8xf32>
    %58 = arith.truncf %57 : vector<8x8xf32> to vector<8x8xbf16>
    %c0_31 = arith.constant 0 : index
    %c1_32 = arith.constant 1 : index
    %c0_33 = arith.constant 0 : index
    %c0_34 = arith.constant 0 : index
    %59 = vector.load %arg8[%c0_31, %c1_32, %c0_33, %c0_34] : memref<1x4x8x8xbf16, #tpu.memory_space<vmem>>, vector<1x1x8x8xbf16>
    %60 = vector.shape_cast %59 : vector<1x1x8x8xbf16> to vector<8x8xbf16>
    %61 = vector.shape_cast %58 : vector<8x8xbf16> to vector<1x1x8x8xbf16>
    tpu.vector_store %arg8[%c0_31, %c1_32, %c0_33, %c0_34], %61 {strides = array<i32>} : memref<1x4x8x8xbf16, #tpu.memory_space<vmem>>, vector<1x1x8x8xbf16>,
    %62 = vector.extract_strided_slice %36 {offsets = [0, 8], sizes = [8, 8], strides = [1, 1]} : vector<8x32xf32> to vector<8x8xf32>
    %63 = arith.truncf %62 : vector<8x8xf32> to vector<8x8xbf16>
    %c0_35 = arith.constant 0 : index
    %c1_36 = arith.constant 1 : index
    %c0_37 = arith.constant 0 : index
    %c0_38 = arith.constant 0 : index
    %64 = vector.load %arg9[%c0_35, %c1_36, %c0_37, %c0_38] : memref<1x4x8x8xbf16, #tpu.memory_space<vmem>>, vector<1x1x8x8xbf16>
    %65 = vector.shape_cast %64 : vector<1x1x8x8xbf16> to vector<8x8xbf16>
    %66 = vector.shape_cast %63 : vector<8x8xbf16> to vector<1x1x8x8xbf16>
    tpu.vector_store %arg9[%c0_35, %c1_36, %c0_37, %c0_38], %66 {strides = array<i32>} : memref<1x4x8x8xbf16, #tpu.memory_space<vmem>>, vector<1x1x8x8xbf16>,
    %67 = vector.extract_strided_slice %34 {offsets = [0, 16], sizes = [8, 8], strides = [1, 1]} : vector<8x32xf32> to vector<8x8xf32>
    %68 = arith.truncf %67 : vector<8x8xf32> to vector<8x8xbf16>
    %c0_39 = arith.constant 0 : index
    %c2 = arith.constant 2 : index
    %c0_40 = arith.constant 0 : index
    %c0_41 = arith.constant 0 : index
    %69 = vector.load %arg7[%c0_39, %c2, %c0_40, %c0_41] : memref<1x4x8x8xbf16, #tpu.memory_space<vmem>>, vector<1x1x8x8xbf16>
    %70 = vector.shape_cast %69 : vector<1x1x8x8xbf16> to vector<8x8xbf16>
    %71 = vector.shape_cast %68 : vector<8x8xbf16> to vector<1x1x8x8xbf16>
    tpu.vector_store %arg7[%c0_39, %c2, %c0_40, %c0_41], %71 {strides = array<i32>} : memref<1x4x8x8xbf16, #tpu.memory_space<vmem>>, vector<1x1x8x8xbf16>,
    %72 = vector.extract_strided_slice %35 {offsets = [0, 16], sizes = [8, 8], strides = [1, 1]} : vector<8x32xf32> to vector<8x8xf32>
    %73 = arith.truncf %72 : vector<8x8xf32> to vector<8x8xbf16>
    %c0_42 = arith.constant 0 : index
    %c2_43 = arith.constant 2 : index
    %c0_44 = arith.constant 0 : index
    %c0_45 = arith.constant 0 : index
    %74 = vector.load %arg8[%c0_42, %c2_43, %c0_44, %c0_45] : memref<1x4x8x8xbf16, #tpu.memory_space<vmem>>, vector<1x1x8x8xbf16>
    %75 = vector.shape_cast %74 : vector<1x1x8x8xbf16> to vector<8x8xbf16>
    %76 = vector.shape_cast %73 : vector<8x8xbf16> to vector<1x1x8x8xbf16>
    tpu.vector_store %arg8[%c0_42, %c2_43, %c0_44, %c0_45], %76 {strides = array<i32>} : memref<1x4x8x8xbf16, #tpu.memory_space<vmem>>, vector<1x1x8x8xbf16>,
    %77 = vector.extract_strided_slice %36 {offsets = [0, 16], sizes = [8, 8], strides = [1, 1]} : vector<8x32xf32> to vector<8x8xf32>
    %78 = arith.truncf %77 : vector<8x8xf32> to vector<8x8xbf16>
    %c0_46 = arith.constant 0 : index
    %c2_47 = arith.constant 2 : index
    %c0_48 = arith.constant 0 : index
    %c0_49 = arith.constant 0 : index
    %79 = vector.load %arg9[%c0_46, %c2_47, %c0_48, %c0_49] : memref<1x4x8x8xbf16, #tpu.memory_space<vmem>>, vector<1x1x8x8xbf16>
    %80 = vector.shape_cast %79 : vector<1x1x8x8xbf16> to vector<8x8xbf16>
    %81 = vector.shape_cast %78 : vector<8x8xbf16> to vector<1x1x8x8xbf16>
    tpu.vector_store %arg9[%c0_46, %c2_47, %c0_48, %c0_49], %81 {strides = array<i32>} : memref<1x4x8x8xbf16, #tpu.memory_space<vmem>>, vector<1x1x8x8xbf16>,
    %82 = vector.extract_strided_slice %34 {offsets = [0, 24], sizes = [8, 8], strides = [1, 1]} : vector<8x32xf32> to vector<8x8xf32>
    %83 = arith.truncf %82 : vector<8x8xf32> to vector<8x8xbf16>
    %c0_50 = arith.constant 0 : index
    %c3 = arith.constant 3 : index
    %c0_51 = arith.constant 0 : index
    %c0_52 = arith.constant 0 : index
    %84 = vector.load %arg7[%c0_50, %c3, %c0_51, %c0_52] : memref<1x4x8x8xbf16, #tpu.memory_space<vmem>>, vector<1x1x8x8xbf16>
    %85 = vector.shape_cast %84 : vector<1x1x8x8xbf16> to vector<8x8xbf16>
    %86 = vector.shape_cast %83 : vector<8x8xbf16> to vector<1x1x8x8xbf16>
    tpu.vector_store %arg7[%c0_50, %c3, %c0_51, %c0_52], %86 {strides = array<i32>} : memref<1x4x8x8xbf16, #tpu.memory_space<vmem>>, vector<1x1x8x8xbf16>,
    %87 = vector.extract_strided_slice %35 {offsets = [0, 24], sizes = [8, 8], strides = [1, 1]} : vector<8x32xf32> to vector<8x8xf32>
    %88 = arith.truncf %87 : vector<8x8xf32> to vector<8x8xbf16>
    %c0_53 = arith.constant 0 : index
    %c3_54 = arith.constant 3 : index
    %c0_55 = arith.constant 0 : index
    %c0_56 = arith.constant 0 : index
    %89 = vector.load %arg8[%c0_53, %c3_54, %c0_55, %c0_56] : memref<1x4x8x8xbf16, #tpu.memory_space<vmem>>, vector<1x1x8x8xbf16>
    %90 = vector.shape_cast %89 : vector<1x1x8x8xbf16> to vector<8x8xbf16>
    %91 = vector.shape_cast %88 : vector<8x8xbf16> to vector<1x1x8x8xbf16>
    tpu.vector_store %arg8[%c0_53, %c3_54, %c0_55, %c0_56], %91 {strides = array<i32>} : memref<1x4x8x8xbf16, #tpu.memory_space<vmem>>, vector<1x1x8x8xbf16>,
    %92 = vector.extract_strided_slice %36 {offsets = [0, 24], sizes = [8, 8], strides = [1, 1]} : vector<8x32xf32> to vector<8x8xf32>
    %93 = arith.truncf %92 : vector<8x8xf32> to vector<8x8xbf16>
    %c0_57 = arith.constant 0 : index
    %c3_58 = arith.constant 3 : index
    %c0_59 = arith.constant 0 : index
    %c0_60 = arith.constant 0 : index
    %94 = vector.load %arg9[%c0_57, %c3_58, %c0_59, %c0_60] : memref<1x4x8x8xbf16, #tpu.memory_space<vmem>>, vector<1x1x8x8xbf16>
    %95 = vector.shape_cast %94 : vector<1x1x8x8xbf16> to vector<8x8xbf16>
    %96 = vector.shape_cast %93 : vector<8x8xbf16> to vector<1x1x8x8xbf16>
    tpu.vector_store %arg9[%c0_57, %c3_58, %c0_59, %c0_60], %96 {strides = array<i32>} : memref<1x4x8x8xbf16, #tpu.memory_space<vmem>>, vector<1x1x8x8xbf16>,
    return
  }
  func.func @transform_0(%arg0: i32, %arg1: i32) -> (i32, i32, i32) {
    %c0_i32 = arith.constant 0 : i32
    %c0_i32_0 = arith.constant 0 : i32
    return %arg0, %arg1, %c0_i32 : i32, i32, i32
  }
  func.func @transform_1(%arg0: i32, %arg1: i32) -> (i32, i32) {
    %c0_i32 = arith.constant 0 : i32
    %c0_i32_0 = arith.constant 0 : i32
    %c0_i32_1 = arith.constant 0 : i32
    return %c0_i32, %c0_i32_0 : i32, i32
  }
  func.func @transform_2(%arg0: i32, %arg1: i32) -> (i32, i32) {
    %c0_i32 = arith.constant 0 : i32
    %c0_i32_0 = arith.constant 0 : i32
    %c0_i32_1 = arith.constant 0 : i32
    return %c0_i32, %c0_i32_0 : i32, i32
  }
  func.func @transform_3(%arg0: i32, %arg1: i32) -> (i32, i32) {
    %c0_i32 = arith.constant 0 : i32
    %c0_i32_0 = arith.constant 0 : i32
    %c0_i32_1 = arith.constant 0 : i32
    return %c0_i32, %c0_i32_0 : i32, i32
  }
  func.func @transform_4(%arg0: i32, %arg1: i32) -> (i32, i32) {
    %c0_i32 = arith.constant 0 : i32
    %c0_i32_0 = arith.constant 0 : i32
    %c0_i32_1 = arith.constant 0 : i32
    return %c0_i32, %c0_i32_0 : i32, i32
  }
  func.func @transform_5(%arg0: i32, %arg1: i32) -> (i32, i32, i32, i32) {
    %c0_i32 = arith.constant 0 : i32
    %c0_i32_0 = arith.constant 0 : i32
    %c0_i32_1 = arith.constant 0 : i32
    return %arg0, %c0_i32, %arg1, %c0_i32_0 : i32, i32, i32, i32
  }
  func.func @transform_6(%arg0: i32, %arg1: i32) -> (i32, i32, i32, i32) {
    %c0_i32 = arith.constant 0 : i32
    %c0_i32_0 = arith.constant 0 : i32
    %c0_i32_1 = arith.constant 0 : i32
    return %arg0, %c0_i32, %arg1, %c0_i32_0 : i32, i32, i32, i32
  }
  func.func @transform_7(%arg0: i32, %arg1: i32) -> (i32, i32, i32, i32) {
    %c0_i32 = arith.constant 0 : i32
    %c0_i32_0 = arith.constant 0 : i32
    %c0_i32_1 = arith.constant 0 : i32
    return %arg0, %c0_i32, %arg1, %c0_i32_0 : i32, i32, i32, i32
  }
}

</mosaic_0001>

<llo_original>
// kernel: gpt_forward.9
$region0: #{gpt_forward.9}
  #allocation0 [shape = 'u32[]', space=smem, size = 0x4, offset = 0x4, fixed_abs, tag = 'smem constant byte address 0x4 - core index']
  #allocation1 [shape = 'u32[144,128]{1,0:T(1,128)}', space=vmem, size = 0x12000, scoped, tag = 'internal scratch']
  %s0 = inlined_call_operand.vmem [shape: bf16[2,8,32], index: 0, kind: input, shape index: {}]
  %s1 = inlined_call_operand.vmem [shape: bf16[32,128], index: 1, kind: input, shape index: {}]
  %s2 = inlined_call_operand.vmem [shape: f32[1,128], index: 2, kind: input, shape index: {}]
  %s3 = inlined_call_operand.hbm [shape: f32[2,8,128], index: 3, kind: output, shape index: {}]
  %s4 = sld [smem:[#allocation0]]
  $region45: #{gpt_forward.9} parent=0
    _
  %s6 = ssub.s32 1, %s4
  %s7 = scalar_select 0, %s6, %s4
  $region1: #{gpt_forward.9} parent=0
    #allocation2 [shape = 'u8[8192]{0}', space=vmem, size = 0x2000, scoped, tag = 'output window, operand 0']
    #allocation3 [shape = 's32[2]{0}', space=sflag, size = 0x8, scoped, tag = 'scoped memory for gpt_forward.9']
    %8 = vsyncpa [#allocation3], 0
    %s9 = scalar_lea.sflag [#allocation3], 1
    %10 = vsyncpa %s9, 0
    loop: start=0, step=1, limit=4
    $region2: #{gpt_forward.9} parent=1 // loop_pre_header
      _
    $region3: #{gpt_forward.9} parent=1 // loop_header
      %s12 = sphi 0, %s16
      %p13 = scmp.ge.s32.totalorder %s12, 4
      %s19 = sphi 0, %s38
      %s20 = sphi 0, %s34
      %s21 = sphi 0, %s30
      %s22 = sphi 0, %s19
      %s23 = sphi 0, %s20
      %s24 = sphi 0, %s21
      %s25 = sphi 0, %s22
      %s26 = sphi 0, %s23
      %s27 = sphi 0, %s24
      %s43 = sphi 0, %s45
      %s46 = sphi 0, %s43
      %s47 = sphi 0, %s46
      %s63 = sphi 0, %s47
      %s69 = sphi 0, %s71
      %s72 = sphi 0, %s69
      %s73 = sphi 0, %s72
      %s89 = sphi 0, %s73
      %s95 = sphi 0, %s97
      %s98 = sphi 0, %s95
      %s99 = sphi 0, %s98
      %s115 = sphi 0, %s99
      %s125 = sphi 0, %s127
      %s128 = sphi 0, %s125
      %s129 = sphi 0, %s128
      %s145 = sphi 0, %s129
    $region4: #{gpt_forward.9} parent=1 // loop_header_branch
      %15 = sbr.rel (%p13) target = $region8
    $region5: #{gpt_forward.9} parent=1 // loop_body
      %s17 = ssub.s32 %s12, 1
      %s18 = ssub.s32 %s12, 2
      %s28 = sadd.s32 1, %s21
      %p29 = scmp.ge.s32.totalorder %s28, 1
      %s30 = scalar_select %p29, 0, %s28
      %s31 = sadd.s32 1, %s20
      %s32 = scalar_select %p29, %s31, %s20
      %p33 = scmp.ge.s32.totalorder %s32, 1
      %s34 = scalar_select %p33, 0, %s32
      %s35 = sadd.s32 1, %s19
      %s36 = scalar_select %p33, %s35, %s19
      %p37 = scmp.ge.s32.totalorder %s36, 2
      %s38 = scalar_select %p37, 0, %s36
      %s39 = ssub.s32 %s19, %s38
      %s40 = ssub.s32 %s21, %s30
      %s41 = sor.u32 %s39, %s40
      %p42 = scmp.eq.s32.totalorder %s41, 0
      %s44 = sadd.s32 %s43, 1
      %s45 = scalar_select %p42, %s43, %s44
      %p48 = pneg %p42
      %p49 = scmp.eq.s32.totalorder %s12, 1
      %p50 = por %p48, %p49
      %p51 = scmp.ne.s32.totalorder %s43, %s46
      %p52 = scmp.eq.s32.totalorder %s12, 0
      %p53 = por %p51, %p52
      %p54 = scmp.ne.s32.totalorder %s43, %s46
      %p55 = scmp.eq.s32.totalorder %s17, 1
      %p56 = por %p54, %p55
      %p57 = scmp.ne.s32.totalorder %s46, %s47
      %p58 = scmp.eq.s32.totalorder %s17, 0
      %p59 = por %p57, %p58
      %p60 = scmp.ne.s32.totalorder %s46, %s47
      %p61 = scmp.eq.s32.totalorder %s18, 1
      %p62 = por %p60, %p61
      %p64 = scmp.ne.s32.totalorder %s47, %s63
      %p65 = scmp.eq.s32.totalorder %s18, 0
      %p66 = por %p64, %p65
      %s67 = ssub.s32 %s20, %s34
      %p68 = scmp.eq.s32.totalorder %s67, 0
      %s70 = sadd.s32 %s69, 1
      %s71 = scalar_select %p68, %s69, %s70
      %p74 = pneg %p68
      %p75 = scmp.eq.s32.totalorder %s12, 1
      %p76 = por %p74, %p75
      %p77 = scmp.ne.s32.totalorder %s69, %s72
      %p78 = scmp.eq.s32.totalorder %s12, 0
      %p79 = por %p77, %p78
      %p80 = scmp.ne.s32.totalorder %s69, %s72
      %p81 = scmp.eq.s32.totalorder %s17, 1
      %p82 = por %p80, %p81
      %p83 = scmp.ne.s32.totalorder %s72, %s73
      %p84 = scmp.eq.s32.totalorder %s17, 0
      %p85 = por %p83, %p84
      %p86 = scmp.ne.s32.totalorder %s72, %s73
      %p87 = scmp.eq.s32.totalorder %s18, 1
      %p88 = por %p86, %p87
      %p90 = scmp.ne.s32.totalorder %s73, %s89
      %p91 = scmp.eq.s32.totalorder %s18, 0
      %p92 = por %p90, %p91
      %s93 = ssub.s32 %s20, %s34
      %p94 = scmp.eq.s32.totalorder %s93, 0
      %s96 = sadd.s32 %s95, 1
      %s97 = scalar_select %p94, %s95, %s96
      %p100 = pneg %p94
      %p101 = scmp.eq.s32.totalorder %s12, 1
      %p102 = por %p100, %p101
      %p103 = scmp.ne.s32.totalorder %s95, %s98
      %p104 = scmp.eq.s32.totalorder %s12, 0
      %p105 = por %p103, %p104
      %p106 = scmp.ne.s32.totalorder %s95, %s98
      %p107 = scmp.eq.s32.totalorder %s17, 1
      %p108 = por %p106, %p107
      %p109 = scmp.ne.s32.totalorder %s98, %s99
      %p110 = scmp.eq.s32.totalorder %s17, 0
      %p111 = por %p109, %p110
      %p112 = scmp.ne.s32.totalorder %s98, %s99
      %p113 = scmp.eq.s32.totalorder %s18, 1
      %p114 = por %p112, %p113
      %p116 = scmp.ne.s32.totalorder %s99, %s115
      %p117 = scmp.eq.s32.totalorder %s18, 0
      %p118 = por %p116, %p117
      %s119 = ssub.s32 %s19, %s38
      %s120 = ssub.s32 %s21, %s30
      %s121 = sor.u32 %s119, %s120
      %s122 = ssub.s32 %s20, %s34
      %s123 = sor.u32 %s121, %s122
      %p124 = scmp.eq.s32.totalorder %s123, 0
      %s126 = sadd.s32 %s125, 1
      %s127 = scalar_select %p124, %s125, %s126
      %p130 = pneg %p124
      %p131 = scmp.eq.s32.totalorder %s12, 1
      %p132 = por %p130, %p131
      %p133 = scmp.ne.s32.totalorder %s125, %s128
      %p134 = scmp.eq.s32.totalorder %s12, 0
      %p135 = por %p133, %p134
      %p136 = scmp.ne.s32.totalorder %s125, %s128
      %p137 = scmp.eq.s32.totalorder %s17, 1
      %p138 = por %p136, %p137
      %p139 = scmp.ne.s32.totalorder %s128, %s129
      %p140 = scmp.eq.s32.totalorder %s17, 0
      %p141 = por %p139, %p140
      %p142 = scmp.ne.s32.totalorder %s128, %s129
      %p143 = scmp.eq.s32.totalorder %s18, 1
      %p144 = por %p142, %p143
      %p146 = scmp.ne.s32.totalorder %s129, %s145
      %p147 = scmp.eq.s32.totalorder %s18, 0
      %p148 = por %p146, %p147
      %p149 = scmp.le.s32.totalorder 1, %s12
      %p150 = scmp.lt.s32.totalorder %s12, 3
      %p151 = pnand %p149, %p150
      %p152 = pneg %p151
      // Predicated region
      $region9: #{gpt_forward.9} parent=5 // pred_check
        _
      $region10: #{gpt_forward.9} parent=5 // pred_check_branch
        %154 = sbr.rel (%p151) target = $region12
      $region11: #{gpt_forward.9} parent=5 // pred_region
        %s155 = ssub.s32 %s12, 1
        // Predicated region
        $region13: #{gpt_forward.9} parent=11 // pred_check
          %p156 = pneg %p85
        $region14: #{gpt_forward.9} parent=11 // pred_check_branch
          %158 = sbr.rel (%p156) target = $region16
        $region15: #{gpt_forward.9} parent=11 // pred_region
          %p159 = scmp.lt.s32.totalorder %s23, 0
          %s160 = scalar_select %p159, %s23, 0
          %s161 = smul.addr %s160, 4
          %s162 = scalar_lea.vmem %s1, %s161
        $region16: #{gpt_forward.9} parent=11 // pred_fallthru
          _
        // Predicated region
        $region17: #{gpt_forward.9} parent=11 // pred_check
          %p163 = pneg %p111
        $region18: #{gpt_forward.9} parent=11 // pred_check_branch
          %165 = sbr.rel (%p163) target = $region20
        $region19: #{gpt_forward.9} parent=11 // pred_region
          %p166 = scmp.lt.s32.totalorder %s23, 0
          %s167 = scalar_select %p166, %s23, 0
          %s168 = scalar_lea.vmem %s2, %s167
        $region20: #{gpt_forward.9} parent=11 // pred_fallthru
          _
      $region12: #{gpt_forward.9} parent=5 // pred_fallthru
        _
      %p169 = scmp.lt.s32.totalorder %s12, 2
      // Predicated region
      $region21: #{gpt_forward.9} parent=5 // pred_check
        %p170 = pneg %p169
      $region22: #{gpt_forward.9} parent=5 // pred_check_branch
        %172 = sbr.rel (%p170) target = $region24
      $region23: #{gpt_forward.9} parent=5 // pred_region
        // Predicated region
        $region25: #{gpt_forward.9} parent=23 // pred_check
          %p173 = pneg %p53
        $region26: #{gpt_forward.9} parent=23 // pred_check_branch
          %175 = sbr.rel (%p173) target = $region28
        $region27: #{gpt_forward.9} parent=23 // pred_region
          %p176 = scmp.lt.s32.totalorder %s19, 1
          %s177 = scalar_select %p176, %s19, 1
          %p178 = scmp.lt.s32.totalorder %s21, 0
          %s179 = scalar_select %p178, %s21, 0
          %s180 = sadd.s32 %s179, %s177
          %s181 = smul.addr %s180, 4
          %s182 = scalar_lea.vmem %s0, %s181
        $region28: #{gpt_forward.9} parent=23 // pred_fallthru
          _
      $region24: #{gpt_forward.9} parent=5 // pred_fallthru
        _
      %p183 = scmp.le.s32.totalorder 1, %s12
      %p184 = scmp.lt.s32.totalorder %s12, 3
      %p185 = pnand %p183, %p184
      %p186 = pneg %p185
      // Predicated region
      $region29: #{gpt_forward.9} parent=5 // pred_check
        _
      $region30: #{gpt_forward.9} parent=5 // pred_check_branch
        %188 = sbr.rel (%p185) target = $region32
      $region31: #{gpt_forward.9} parent=5 // pred_region
        %s189 = ssub.s32 %s12, 1
        %p190 = scmp.lt.s32.totalorder %s22, 1
        %s191 = scalar_select %p190, %s22, 1
        %p192 = scmp.lt.s32.totalorder %s24, 0
        %s193 = scalar_select %p192, %s24, 0
        %s194 = sadd.s32 %s193, %s191
        %s195 = smul.addr %s194, 4
        %s196 = scalar_lea.vmem %s0, %s195
        %p197 = pneg %p59
        %p198 = pneg %p56
        %p199 = scmp.lt.s32.totalorder %s23, 0
        %s200 = scalar_select %p199, %s23, 0
        %s201 = smul.addr %s200, 4
        %s202 = scalar_lea.vmem %s1, %s201
        %p203 = pneg %p85
        %p204 = pneg %p82
        %p205 = scmp.lt.s32.totalorder %s23, 0
        %s206 = scalar_select %p205, %s23, 0
        %s207 = scalar_lea.vmem %s2, %s206
        %p208 = pneg %p111
        %p209 = pneg %p108
        %p210 = pneg %p141
        %p211 = pneg %p138
        %s212 = sand.u32 %s128, 1
        %s213 = scalar_lea.sflag [#allocation3], %s212
        %s214 = sand.u32 %s128, 1
        %s215 = smul.addr %s214, 8
        %s216 = scalar_lea.vmem [#allocation2], %s215
        %p217 = scmp.lt.s32.totalorder %s22, 1
        %s218 = scalar_select %p217, %s22, 1
        %p219 = scmp.lt.s32.totalorder %s24, 0
        %s220 = scalar_select %p219, %s24, 0
        %s221 = sadd.s32 %s220, %s218
        %s222 = smul.addr %s221, 4
        %s223 = scalar_lea.vmem %s0, %s222
        %p224 = scmp.lt.s32.totalorder %s23, 0
        %s225 = scalar_select %p224, %s23, 0
        %s226 = smul.addr %s225, 4
        %s227 = scalar_lea.vmem %s1, %s226
        %p228 = scmp.lt.s32.totalorder %s23, 0
        %s229 = scalar_select %p228, %s23, 0
        %s230 = scalar_lea.vmem %s2, %s229
        %v232 = vld [vmem:[%s223] sm:$0xf]
        %v233 = vld [vmem:[%s227] sm:$0xf]
        %v234 = vld [vmem:[%s227 + $0x4] sm:$0xf]
        %v235 = vld [vmem:[%s227 + $0x8] sm:$0xf]
        %v236 = vld [vmem:[%s227 + $0xc] sm:$0xf]
        %v237 = vld [vmem:[%s230] sm:$0x1]
        %v239 = vlaneseq
        %v240 = vshrl.u32 %v239, 7
        %v241 = vsub.s32 0, %v240
        %v242 = vrot.slane %v237, %v241
        %v248 = vunpack.c.l.b16 %v233
        %v249 = vunpack.c.l.b16 %v234
        %v250 = vunpack.c.l.b16 %v235
        %v251 = vunpack.c.l.b16 %v236
        %v252 = vpack.c.b16 %v249, %v248
        %v253 = vpack.c.b16 %v251, %v250
        %vm256 = vcmask 261120
        %v258 = vsel %vm256, %v232, 0
        %260 = vmatprep.subr.bf16.mxu0 0
        %261 = vmatpush1.bf16.msra.mxu0 %v252
        %262 = vmatprep.subr.bf16.mxu0 0
        %263 = vmatpush1.bf16.msra.mxu0 %v253
        %264 = vmatprep.subr.bf16.mxu0 0
        %265 = vmatpush1.bf16.msra.mxu0 0
        %266 = vmatprep.subr.bf16.mxu0 0
        %267 = vmatpush1.bf16.msra.mxu0 0
        %268 = vmatprep.subr.bf16.mxu0 0
        %269 = vmatpush1.bf16.msra.mxu0 0
        %270 = vmatprep.subr.bf16.mxu0 0
        %271 = vmatpush1.bf16.msra.mxu0 0
        %272 = vmatprep.subr.bf16.mxu0 0
        %273 = vmatpush1.bf16.msra.mxu0 0
        %274 = vmatprep.subr.bf16.mxu0 0
        %275 = vmatpush1.bf16.msra.mxu0 0
        %276 = vmatprep.subr.bf16.mxu0 0
        %277 = vmatpush1.bf16.msra.mxu0 0
        %278 = vmatprep.subr.bf16.mxu0 0
        %279 = vmatpush1.bf16.msra.mxu0 0
        %280 = vmatprep.subr.bf16.mxu0 0
        %281 = vmatpush1.bf16.msra.mxu0 0
        %282 = vmatprep.subr.bf16.mxu0 0
        %283 = vmatpush1.bf16.msra.mxu0 0
        %284 = vmatprep.subr.bf16.mxu0 0
        %285 = vmatpush1.bf16.msra.mxu0 0
        %286 = vmatprep.subr.bf16.mxu0 0
        %287 = vmatpush1.bf16.msra.mxu0 0
        %288 = vmatprep.subr.bf16.mxu0 0
        %289 = vmatpush1.bf16.msra.mxu0 0
        %290 = vmatprep.subr.bf16.mxu0 0
        %291 = vmatpush1.bf16.msra.mxu0 0
        %292 = vmatprep.mubr.bf16.mxu0 0
        %293 = vmatmul.mubr.bf16.gmra.mrb[0].mxu0 %v258
        %v294 = vpop.f32.mrb[0].mxu0
        %v295 = vadd.f32 %v242, %v294
        %v296 = vpop.f32.mrb[0].mxu0
        %v297 = vpop.f32.mrb[0].mxu0
        %v298 = vpop.f32.mrb[0].mxu0
        %299 = vdwg.mxu0
        %300 = vst [vmem:[%s216] sm:$0xff] %v295
        %s301 = sand.u32 %s128, 1
        %s302 = scalar_lea.sflag [#allocation3], %s301
        %s303 = sand.u32 %s128, 1
        %s304 = smul.addr %s303, 8
        %s305 = scalar_lea.vmem [#allocation2], %s304
        // Predicated region
        $region33: #{gpt_forward.9} parent=31 // pred_check
          %p306 = pneg %p138
        $region34: #{gpt_forward.9} parent=31 // pred_check_branch
          %308 = sbr.rel (%p306) target = $region36
        $region35: #{gpt_forward.9} parent=31 // pred_region
          %s310 = ssub.s32 128, 128
          %311 = vsyncadd %s302, %s310
          %s312 = sadd.s32 %s23, %s24
          %s313 = sadd.s32 %s312, %s22
          %s314 = smul.addr %s313, 128
          %s315 = scalar_lea.hbm %s3, %s314
          %s317 = sshll.u32 %s305, 4
          %s318 = int_to_ptr.vmem [resolvable:$true] %s317
          %320 = dma.vmem_to_hbm [thread:$0]  %s318, 128, %s315, %s302
        $region36: #{gpt_forward.9} parent=31 // pred_fallthru
          _
      $region32: #{gpt_forward.9} parent=5 // pred_fallthru
        _
      %p321 = scmp.le.s32.totalorder 2, %s12
      // Predicated region
      $region37: #{gpt_forward.9} parent=5 // pred_check
        %p322 = pneg %p321
      $region38: #{gpt_forward.9} parent=5 // pred_check_branch
        %324 = sbr.rel (%p322) target = $region40
      $region39: #{gpt_forward.9} parent=5 // pred_region
        %s325 = ssub.s32 %s12, 2
        // Predicated region
        $region41: #{gpt_forward.9} parent=39 // pred_check
          %p326 = pneg %p144
        $region42: #{gpt_forward.9} parent=39 // pred_check_branch
          %328 = sbr.rel (%p326) target = $region44
        $region43: #{gpt_forward.9} parent=39 // pred_region
          %s329 = sand.u32 %s129, 1
          %s330 = scalar_lea.sflag [#allocation3], %s329
          %s331 = sand.u32 %s129, 1
          %s332 = smul.addr %s331, 8
          %s333 = scalar_lea.vmem [#allocation2], %s332
          %334 = dma.done %s330, 128
        $region44: #{gpt_forward.9} parent=39 // pred_fallthru
          _
      $region40: #{gpt_forward.9} parent=5 // pred_fallthru
        _
    $region6: #{gpt_forward.9} parent=1 // loop_footer
      %s16 = sadd.s32 1, %s12
    $region7: #{gpt_forward.9} parent=1 // loop_footer_branch
      %11 = sbr.rel target = $region3
    $region8: #{gpt_forward.9} parent=1 // loop_exit
      _
    %335 = vsyncpa [#allocation3], 1
    %s336 = scalar_lea.sflag [#allocation3], 1
    %337 = vsyncpa %s336, 1

// kernel: gpt_forward.5
$region0: #{gpt_forward.5}
  #allocation0 [shape = 'u32[]', space=smem, size = 0x4, offset = 0x4, fixed_abs, tag = 'smem constant byte address 0x4 - core index']
  #allocation1 [shape = 'u32[144,128]{1,0:T(1,128)}', space=vmem, size = 0x12000, scoped, tag = 'internal scratch']
  %s0 = inlined_call_operand.vmem [shape: f32[2,8,32], index: 0, kind: input, shape index: {}]
  %s1 = inlined_call_operand.vmem [shape: f32[1,32], index: 1, kind: input, shape index: {}]
  %s2 = inlined_call_operand.vmem [shape: f32[1,32], index: 2, kind: input, shape index: {}]
  %s3 = inlined_call_operand.vmem [shape: bf16[32,96], index: 3, kind: input, shape index: {}]
  %s4 = inlined_call_operand.vmem [shape: f32[1,96], index: 4, kind: input, shape index: {}]
  %s5 = inlined_call_operand.vmem [shape: bf16[2,4,8,8], index: 5, kind: output, shape index: {0}]
  %s6 = inlined_call_operand.vmem [shape: bf16[2,4,8,8], index: 6, kind: output, shape index: {1}]
  %s7 = inlined_call_operand.vmem [shape: bf16[2,4,8,8], index: 7, kind: output, shape index: {2}]
  %8 = xla_tuple %s5, %s6, %s7
  %s9 = sld [smem:[#allocation0]]
  $region69: #{gpt_forward.5} parent=0
    _
  %s11 = ssub.s32 1, %s9
  %s12 = scalar_select 0, %s11, %s9
  loop: start=0, step=1, limit=4
  $region2: #{gpt_forward.5} parent=0 // loop_pre_header
    _
  $region3: #{gpt_forward.5} parent=0 // loop_header
    %s14 = sphi 0, %s18
    %p15 = scmp.ge.s32.totalorder %s14, 4
    %s21 = sphi 0, %s33
    %s22 = sphi 0, %s29
    %s23 = sphi 0, %s21
    %s24 = sphi 0, %s22
    %s25 = sphi 0, %s23
    %s26 = sphi 0, %s24
    %s38 = sphi 0, %s40
    %s41 = sphi 0, %s38
    %s42 = sphi 0, %s41
    %s58 = sphi 0, %s42
    %s62 = sphi 0, %s62
    %s64 = sphi 0, %s62
    %s65 = sphi 0, %s64
    %s79 = sphi 0, %s65
    %s83 = sphi 0, %s83
    %s85 = sphi 0, %s83
    %s86 = sphi 0, %s85
    %s100 = sphi 0, %s86
    %s104 = sphi 0, %s104
    %s106 = sphi 0, %s104
    %s107 = sphi 0, %s106
    %s121 = sphi 0, %s107
    %s125 = sphi 0, %s125
    %s127 = sphi 0, %s125
    %s128 = sphi 0, %s127
    %s142 = sphi 0, %s128
    %s150 = sphi 0, %s152
    %s153 = sphi 0, %s150
    %s154 = sphi 0, %s153
    %s170 = sphi 0, %s154
    %s178 = sphi 0, %s180
    %s181 = sphi 0, %s178
    %s182 = sphi 0, %s181
    %s198 = sphi 0, %s182
    %s206 = sphi 0, %s208
    %s209 = sphi 0, %s206
    %s210 = sphi 0, %s209
    %s226 = sphi 0, %s210
  $region4: #{gpt_forward.5} parent=0 // loop_header_branch
    %17 = sbr.rel (%p15) target = $region8
  $region5: #{gpt_forward.5} parent=0 // loop_body
    %s19 = ssub.s32 %s14, 1
    %s20 = ssub.s32 %s14, 2
    %s27 = sadd.s32 1, %s22
    %p28 = scmp.ge.s32.totalorder %s27, 1
    %s29 = scalar_select %p28, 0, %s27
    %s30 = sadd.s32 1, %s21
    %s31 = scalar_select %p28, %s30, %s21
    %p32 = scmp.ge.s32.totalorder %s31, 2
    %s33 = scalar_select %p32, 0, %s31
    %s34 = ssub.s32 %s21, %s33
    %s35 = ssub.s32 %s22, %s29
    %s36 = sor.u32 %s34, %s35
    %p37 = scmp.eq.s32.totalorder %s36, 0
    %s39 = sadd.s32 %s38, 1
    %s40 = scalar_select %p37, %s38, %s39
    %p43 = pneg %p37
    %p44 = scmp.eq.s32.totalorder %s14, 1
    %p45 = por %p43, %p44
    %p46 = scmp.ne.s32.totalorder %s38, %s41
    %p47 = scmp.eq.s32.totalorder %s14, 0
    %p48 = por %p46, %p47
    %p49 = scmp.ne.s32.totalorder %s38, %s41
    %p50 = scmp.eq.s32.totalorder %s19, 1
    %p51 = por %p49, %p50
    %p52 = scmp.ne.s32.totalorder %s41, %s42
    %p53 = scmp.eq.s32.totalorder %s19, 0
    %p54 = por %p52, %p53
    %p55 = scmp.ne.s32.totalorder %s41, %s42
    %p56 = scmp.eq.s32.totalorder %s20, 1
    %p57 = por %p55, %p56
    %p59 = scmp.ne.s32.totalorder %s42, %s58
    %p60 = scmp.eq.s32.totalorder %s20, 0
    %p61 = por %p59, %p60
    %s63 = sadd.s32 %s62, 1
    %p66 = scmp.eq.s32.totalorder %s14, 1
    %p67 = scmp.ne.s32.totalorder %s62, %s64
    %p68 = scmp.eq.s32.totalorder %s14, 0
    %p69 = por %p67, %p68
    %p70 = scmp.ne.s32.totalorder %s62, %s64
    %p71 = scmp.eq.s32.totalorder %s19, 1
    %p72 = por %p70, %p71
    %p73 = scmp.ne.s32.totalorder %s64, %s65
    %p74 = scmp.eq.s32.totalorder %s19, 0
    %p75 = por %p73, %p74
    %p76 = scmp.ne.s32.totalorder %s64, %s65
    %p77 = scmp.eq.s32.totalorder %s20, 1
    %p78 = por %p76, %p77
    %p80 = scmp.ne.s32.totalorder %s65, %s79
    %p81 = scmp.eq.s32.totalorder %s20, 0
    %p82 = por %p80, %p81
    %s84 = sadd.s32 %s83, 1
    %p87 = scmp.eq.s32.totalorder %s14, 1
    %p88 = scmp.ne.s32.totalorder %s83, %s85
    %p89 = scmp.eq.s32.totalorder %s14, 0
    %p90 = por %p88, %p89
    %p91 = scmp.ne.s32.totalorder %s83, %s85
    %p92 = scmp.eq.s32.totalorder %s19, 1
    %p93 = por %p91, %p92
    %p94 = scmp.ne.s32.totalorder %s85, %s86
    %p95 = scmp.eq.s32.totalorder %s19, 0
    %p96 = por %p94, %p95
    %p97 = scmp.ne.s32.totalorder %s85, %s86
    %p98 = scmp.eq.s32.totalorder %s20, 1
    %p99 = por %p97, %p98
    %p101 = scmp.ne.s32.totalorder %s86, %s100
    %p102 = scmp.eq.s32.totalorder %s20, 0
    %p103 = por %p101, %p102
    %s105 = sadd.s32 %s104, 1
    %p108 = scmp.eq.s32.totalorder %s14, 1
    %p109 = scmp.ne.s32.totalorder %s104, %s106
    %p110 = scmp.eq.s32.totalorder %s14, 0
    %p111 = por %p109, %p110
    %p112 = scmp.ne.s32.totalorder %s104, %s106
    %p113 = scmp.eq.s32.totalorder %s19, 1
    %p114 = por %p112, %p113
    %p115 = scmp.ne.s32.totalorder %s106, %s107
    %p116 = scmp.eq.s32.totalorder %s19, 0
    %p117 = por %p115, %p116
    %p118 = scmp.ne.s32.totalorder %s106, %s107
    %p119 = scmp.eq.s32.totalorder %s20, 1
    %p120 = por %p118, %p119
    %p122 = scmp.ne.s32.totalorder %s107, %s121
    %p123 = scmp.eq.s32.totalorder %s20, 0
    %p124 = por %p122, %p123
    %s126 = sadd.s32 %s125, 1
    %p129 = scmp.eq.s32.totalorder %s14, 1
    %p130 = scmp.ne.s32.totalorder %s125, %s127
    %p131 = scmp.eq.s32.totalorder %s14, 0
    %p132 = por %p130, %p131
    %p133 = scmp.ne.s32.totalorder %s125, %s127
    %p134 = scmp.eq.s32.totalorder %s19, 1
    %p135 = por %p133, %p134
    %p136 = scmp.ne.s32.totalorder %s127, %s128
    %p137 = scmp.eq.s32.totalorder %s19, 0
    %p138 = por %p136, %p137
    %p139 = scmp.ne.s32.totalorder %s127, %s128
    %p140 = scmp.eq.s32.totalorder %s20, 1
    %p141 = por %p139, %p140
    %p143 = scmp.ne.s32.totalorder %s128, %s142
    %p144 = scmp.eq.s32.totalorder %s20, 0
    %p145 = por %p143, %p144
    %s146 = ssub.s32 %s21, %s33
    %s147 = ssub.s32 %s22, %s29
    %s148 = sor.u32 %s146, %s147
    %p149 = scmp.eq.s32.totalorder %s148, 0
    %s151 = sadd.s32 %s150, 1
    %s152 = scalar_select %p149, %s150, %s151
    %p155 = pneg %p149
    %p156 = scmp.eq.s32.totalorder %s14, 1
    %p157 = por %p155, %p156
    %p158 = scmp.ne.s32.totalorder %s150, %s153
    %p159 = scmp.eq.s32.totalorder %s14, 0
    %p160 = por %p158, %p159
    %p161 = scmp.ne.s32.totalorder %s150, %s153
    %p162 = scmp.eq.s32.totalorder %s19, 1
    %p163 = por %p161, %p162
    %p164 = scmp.ne.s32.totalorder %s153, %s154
    %p165 = scmp.eq.s32.totalorder %s19, 0
    %p166 = por %p164, %p165
    %p167 = scmp.ne.s32.totalorder %s153, %s154
    %p168 = scmp.eq.s32.totalorder %s20, 1
    %p169 = por %p167, %p168
    %p171 = scmp.ne.s32.totalorder %s154, %s170
    %p172 = scmp.eq.s32.totalorder %s20, 0
    %p173 = por %p171, %p172
    %s174 = ssub.s32 %s21, %s33
    %s175 = ssub.s32 %s22, %s29
    %s176 = sor.u32 %s174, %s175
    %p177 = scmp.eq.s32.totalorder %s176, 0
    %s179 = sadd.s32 %s178, 1
    %s180 = scalar_select %p177, %s178, %s179
    %p183 = pneg %p177
    %p184 = scmp.eq.s32.totalorder %s14, 1
    %p185 = por %p183, %p184
    %p186 = scmp.ne.s32.totalorder %s178, %s181
    %p187 = scmp.eq.s32.totalorder %s14, 0
    %p188 = por %p186, %p187
    %p189 = scmp.ne.s32.totalorder %s178, %s181
    %p190 = scmp.eq.s32.totalorder %s19, 1
    %p191 = por %p189, %p190
    %p192 = scmp.ne.s32.totalorder %s181, %s182
    %p193 = scmp.eq.s32.totalorder %s19, 0
    %p194 = por %p192, %p193
    %p195 = scmp.ne.s32.totalorder %s181, %s182
    %p196 = scmp.eq.s32.totalorder %s20, 1
    %p197 = por %p195, %p196
    %p199 = scmp.ne.s32.totalorder %s182, %s198
    %p200 = scmp.eq.s32.totalorder %s20, 0
    %p201 = por %p199, %p200
    %s202 = ssub.s32 %s21, %s33
    %s203 = ssub.s32 %s22, %s29
    %s204 = sor.u32 %s202, %s203
    %p205 = scmp.eq.s32.totalorder %s204, 0
    %s207 = sadd.s32 %s206, 1
    %s208 = scalar_select %p205, %s206, %s207
    %p211 = pneg %p205
    %p212 = scmp.eq.s32.totalorder %s14, 1
    %p213 = por %p211, %p212
    %p214 = scmp.ne.s32.totalorder %s206, %s209
    %p215 = scmp.eq.s32.totalorder %s14, 0
    %p216 = por %p214, %p215
    %p217 = scmp.ne.s32.totalorder %s206, %s209
    %p218 = scmp.eq.s32.totalorder %s19, 1
    %p219 = por %p217, %p218
    %p220 = scmp.ne.s32.totalorder %s209, %s210
    %p221 = scmp.eq.s32.totalorder %s19, 0
    %p222 = por %p220, %p221
    %p223 = scmp.ne.s32.totalorder %s209, %s210
    %p224 = scmp.eq.s32.totalorder %s20, 1
    %p225 = por %p223, %p224
    %p227 = scmp.ne.s32.totalorder %s210, %s226
    %p228 = scmp.eq.s32.totalorder %s20, 0
    %p229 = por %p227, %p228
    %p230 = scmp.le.s32.totalorder 1, %s14
    %p231 = scmp.lt.s32.totalorder %s14, 3
    %p232 = pnand %p230, %p231
    %p233 = pneg %p232
    // Predicated region
    $region9: #{gpt_forward.5} parent=5 // pred_check
      _
    $region10: #{gpt_forward.5} parent=5 // pred_check_branch
      %235 = sbr.rel (%p232) target = $region12
    $region11: #{gpt_forward.5} parent=5 // pred_region
      %s236 = ssub.s32 %s14, 1
      // Predicated region
      $region13: #{gpt_forward.5} parent=11 // pred_check
        %p237 = pneg %p75
      $region14: #{gpt_forward.5} parent=11 // pred_check_branch
        %239 = sbr.rel (%p237) target = $region16
      $region15: #{gpt_forward.5} parent=11 // pred_region
        _
      $region16: #{gpt_forward.5} parent=11 // pred_fallthru
        _
      // Predicated region
      $region17: #{gpt_forward.5} parent=11 // pred_check
        %p240 = pneg %p96
      $region18: #{gpt_forward.5} parent=11 // pred_check_branch
        %242 = sbr.rel (%p240) target = $region20
      $region19: #{gpt_forward.5} parent=11 // pred_region
        _
      $region20: #{gpt_forward.5} parent=11 // pred_fallthru
        _
      // Predicated region
      $region21: #{gpt_forward.5} parent=11 // pred_check
        %p243 = pneg %p117
      $region22: #{gpt_forward.5} parent=11 // pred_check_branch
        %245 = sbr.rel (%p243) target = $region24
      $region23: #{gpt_forward.5} parent=11 // pred_region
        _
      $region24: #{gpt_forward.5} parent=11 // pred_fallthru
        _
      // Predicated region
      $region25: #{gpt_forward.5} parent=11 // pred_check
        %p246 = pneg %p138
      $region26: #{gpt_forward.5} parent=11 // pred_check_branch
        %248 = sbr.rel (%p246) target = $region28
      $region27: #{gpt_forward.5} parent=11 // pred_region
        _
      $region28: #{gpt_forward.5} parent=11 // pred_fallthru
        _
    $region12: #{gpt_forward.5} parent=5 // pred_fallthru
      _
    %p249 = scmp.lt.s32.totalorder %s14, 2
    // Predicated region
    $region29: #{gpt_forward.5} parent=5 // pred_check
      %p250 = pneg %p249
    $region30: #{gpt_forward.5} parent=5 // pred_check_branch
      %252 = sbr.rel (%p250) target = $region32
    $region31: #{gpt_forward.5} parent=5 // pred_region
      // Predicated region
      $region33: #{gpt_forward.5} parent=31 // pred_check
        %p253 = pneg %p48
      $region34: #{gpt_forward.5} parent=31 // pred_check_branch
        %255 = sbr.rel (%p253) target = $region36
      $region35: #{gpt_forward.5} parent=31 // pred_region
        %p256 = scmp.lt.s32.totalorder %s21, 1
        %s257 = scalar_select %p256, %s21, 1
        %p258 = scmp.lt.s32.totalorder %s22, 0
        %s259 = scalar_select %p258, %s22, 0
        %s260 = sadd.s32 %s259, %s257
        %s261 = smul.addr %s260, 8
        %s262 = scalar_lea.vmem %s0, %s261
      $region36: #{gpt_forward.5} parent=31 // pred_fallthru
        _
    $region32: #{gpt_forward.5} parent=5 // pred_fallthru
      _
    %p263 = scmp.le.s32.totalorder 1, %s14
    %p264 = scmp.lt.s32.totalorder %s14, 3
    %p265 = pnand %p263, %p264
    %p266 = pneg %p265
    // Predicated region
    $region37: #{gpt_forward.5} parent=5 // pred_check
      _
    $region38: #{gpt_forward.5} parent=5 // pred_check_branch
      %268 = sbr.rel (%p265) target = $region40
    $region39: #{gpt_forward.5} parent=5 // pred_region
      %s269 = ssub.s32 %s14, 1
      %p270 = scmp.lt.s32.totalorder %s23, 1
      %s271 = scalar_select %p270, %s23, 1
      %p272 = scmp.lt.s32.totalorder %s24, 0
      %s273 = scalar_select %p272, %s24, 0
      %s274 = sadd.s32 %s273, %s271
      %s275 = smul.addr %s274, 8
      %s276 = scalar_lea.vmem %s0, %s275
      %p277 = pneg %p54
      %p278 = pneg %p51
      %p279 = pneg %p75
      %p280 = pneg %p72
      %p281 = pneg %p96
      %p282 = pneg %p93
      %p283 = pneg %p117
      %p284 = pneg %p114
      %p285 = pneg %p138
      %p286 = pneg %p135
      %p287 = pneg %p166
      %p288 = pneg %p163
      %p289 = scmp.lt.s32.totalorder %s23, 1
      %s290 = scalar_select %p289, %s23, 1
      %p291 = scmp.lt.s32.totalorder %s24, 0
      %s292 = scalar_select %p291, %s24, 0
      %s293 = smul.addr %s290, 4
      %s294 = sadd.s32 %s292, %s293
      %s295 = smul.addr %s294, 4
      %s296 = scalar_lea.vmem %s5, %s295
      %p297 = pneg %p194
      %p298 = pneg %p191
      %p299 = scmp.lt.s32.totalorder %s23, 1
      %s300 = scalar_select %p299, %s23, 1
      %p301 = scmp.lt.s32.totalorder %s24, 0
      %s302 = scalar_select %p301, %s24, 0
      %s303 = smul.addr %s300, 4
      %s304 = sadd.s32 %s302, %s303
      %s305 = smul.addr %s304, 4
      %s306 = scalar_lea.vmem %s6, %s305
      %p307 = pneg %p222
      %p308 = pneg %p219
      %p309 = scmp.lt.s32.totalorder %s23, 1
      %s310 = scalar_select %p309, %s23, 1
      %p311 = scmp.lt.s32.totalorder %s24, 0
      %s312 = scalar_select %p311, %s24, 0
      %s313 = smul.addr %s310, 4
      %s314 = sadd.s32 %s312, %s313
      %s315 = smul.addr %s314, 4
      %s316 = scalar_lea.vmem %s7, %s315
      %p317 = scmp.lt.s32.totalorder %s23, 1
      %s318 = scalar_select %p317, %s23, 1
      %p319 = scmp.lt.s32.totalorder %s24, 0
      %s320 = scalar_select %p319, %s24, 0
      %s321 = sadd.s32 %s320, %s318
      %s322 = smul.addr %s321, 8
      %s323 = scalar_lea.vmem %s0, %s322
      %p324 = scmp.lt.s32.totalorder %s23, 1
      %s325 = scalar_select %p324, %s23, 1
      %p326 = scmp.lt.s32.totalorder %s24, 0
      %s327 = scalar_select %p326, %s24, 0
      %s328 = smul.addr %s325, 4
      %s329 = sadd.s32 %s327, %s328
      %s330 = smul.addr %s329, 4
      %s331 = scalar_lea.vmem %s5, %s330
      %p332 = scmp.lt.s32.totalorder %s23, 1
      %s333 = scalar_select %p332, %s23, 1
      %p334 = scmp.lt.s32.totalorder %s24, 0
      %s335 = scalar_select %p334, %s24, 0
      %s336 = smul.addr %s333, 4
      %s337 = sadd.s32 %s335, %s336
      %s338 = smul.addr %s337, 4
      %s339 = scalar_lea.vmem %s6, %s338
      %p340 = scmp.lt.s32.totalorder %s23, 1
      %s341 = scalar_select %p340, %s23, 1
      %p342 = scmp.lt.s32.totalorder %s24, 0
      %s343 = scalar_select %p342, %s24, 0
      %s344 = smul.addr %s341, 4
      %s345 = sadd.s32 %s343, %s344
      %s346 = smul.addr %s345, 4
      %s347 = scalar_lea.vmem %s7, %s346
      %v349 = vld [vmem:[%s323] sm:$0xff]
      %v350 = vld [vmem:[%s1] sm:$0x1]
      %v351 = vld [vmem:[%s2] sm:$0x1]
      %vm352 = vcmask 261120
      %v353 = vsel %vm352, %v349, 0.0
      %354 = vadd.xlane.f32.xlu0 %v353
      %v355 = vpop.xlane.xlu0 %354
      %v356 = vrcp.pop 32.0
      %v357 = vmul.f32 %v355, %v356
      %v358 = vsub.f32 %v349, %v357
      %v359 = vmul.f32 %v358, %v358
      %v360 = vsel %vm352, %v359, 0.0
      %361 = vadd.xlane.f32.xlu0 %v360
      %v362 = vpop.xlane.xlu0 %361
      %v363 = vmul.f32 %v362, %v356
      %v364 = vadd.f32 %v363, 32.0
      %v365 = vrsqrt.pop %v364
      %v366 = vmul.f32 %v358, %v365
      %v368 = vlaneseq
      %v369 = vshrl.u32 %v368, 7
      %v370 = vsub.s32 0, %v369
      %v371 = vrot.slane %v350, %v370
      %v373 = vmul.f32 %v366, %v371
      %v375 = vlaneseq
      %v376 = vshrl.u32 %v375, 7
      %v377 = vsub.s32 0, %v376
      %v378 = vrot.slane %v351, %v377
      %v380 = vadd.f32 %v373, %v378
      %v381 = vpack.c.bf16 %v380, %v380
      %v382 = vld [vmem:[%s3] sm:$0xf]
      %v383 = vld [vmem:[%s3 + $0x4] sm:$0xf]
      %v384 = vld [vmem:[%s3 + $0x8] sm:$0xf]
      %v385 = vld [vmem:[%s3 + $0xc] sm:$0xf]
      %v386 = vld [vmem:[%s4] sm:$0x1]
      %v388 = vlaneseq
      %v389 = vshrl.u32 %v388, 7
      %v390 = vsub.s32 0, %v389
      %v391 = vrot.slane %v386, %v390
      %v397 = vunpack.c.l.b16 %v382
      %v398 = vunpack.c.l.b16 %v383
      %v399 = vunpack.c.l.b16 %v384
      %v400 = vunpack.c.l.b16 %v385
      %v401 = vpack.c.b16 %v398, %v397
      %v402 = vpack.c.b16 %v400, %v399
      %v406 = vsel %vm352, %v381, 0
      %408 = vmatprep.subr.bf16.mxu0 0
      %409 = vmatpush1.bf16.msra.mxu0 %v401
      %410 = vmatprep.subr.bf16.mxu0 0
      %411 = vmatpush1.bf16.msra.mxu0 %v402
      %412 = vmatprep.subr.bf16.mxu0 0
      %413 = vmatpush1.bf16.msra.mxu0 0
      %414 = vmatprep.subr.bf16.mxu0 0
      %415 = vmatpush1.bf16.msra.mxu0 0
      %416 = vmatprep.subr.bf16.mxu0 0
      %417 = vmatpush1.bf16.msra.mxu0 0
      %418 = vmatprep.subr.bf16.mxu0 0
      %419 = vmatpush1.bf16.msra.mxu0 0
      %420 = vmatprep.subr.bf16.mxu0 0
      %421 = vmatpush1.bf16.msra.mxu0 0
      %422 = vmatprep.subr.bf16.mxu0 0
      %423 = vmatpush1.bf16.msra.mxu0 0
      %424 = vmatprep.subr.bf16.mxu0 0
      %425 = vmatpush1.bf16.msra.mxu0 0
      %426 = vmatprep.subr.bf16.mxu0 0
      %427 = vmatpush1.bf16.msra.mxu0 0
      %428 = vmatprep.subr.bf16.mxu0 0
      %429 = vmatpush1.bf16.msra.mxu0 0
      %430 = vmatprep.subr.bf16.mxu0 0
      %431 = vmatpush1.bf16.msra.mxu0 0
      %432 = vmatprep.subr.bf16.mxu0 0
      %433 = vmatpush1.bf16.msra.mxu0 0
      %434 = vmatprep.subr.bf16.mxu0 0
      %435 = vmatpush1.bf16.msra.mxu0 0
      %436 = vmatprep.subr.bf16.mxu0 0
      %437 = vmatpush1.bf16.msra.mxu0 0
      %438 = vmatprep.subr.bf16.mxu0 0
      %439 = vmatpush1.bf16.msra.mxu0 0
      %440 = vmatprep.mubr.bf16.mxu0 0
      %441 = vmatmul.mubr.bf16.gmra.mrb[0].mxu0 %v406
      %v442 = vpop.f32.mrb[0].mxu0
      %v443 = vadd.f32 %v391, %v442
      %v444 = vpop.f32.mrb[0].mxu0
      %v445 = vpop.f32.mrb[0].mxu0
      %v446 = vpop.f32.mrb[0].mxu0
      %447 = vdwg.mxu0
      %v448 = vmul.f32 %v443, 0.35355338
      %v449 = vpack.c.bf16 %v448, %v448
      %vm450 = vcmask 60416
      %451 = vst.msk [vmem:[%s331] sm:$0xf] %vm450, %v449
      %v452 = vpack.c.bf16 %v443, %v443
      %v454 = vunpack.c.l.b16 %v452
      %v455 = vpack.c.b16 %v454, %v454
      %456 = vrot.lane.b32.xlu0 %v455, 96
      %v457 = vpop.permute.xlu0 %456
      %459 = vst.msk [vmem:[%s339] sm:$0xf] %vm450, %v457
      %460 = vrot.lane.b32.xlu0 %v455, 64
      %v461 = vpop.permute.xlu0 %460
      %463 = vst.msk [vmem:[%s347] sm:$0xf] %vm450, %v461
      %v465 = vunpack.c.l.b16 %v449
      %v466 = vpack.c.b16 %v465, %v465
      %467 = vrot.lane.b32.xlu0 %v466, 120
      %v468 = vpop.permute.xlu0 %467
      %s470 = scalar_lea.vmem %s331, 4
      %471 = vst.msk [vmem:[%s470] sm:$0xf] %vm450, %v468
      %472 = vrot.lane.b32.xlu0 %v455, 88
      %v473 = vpop.permute.xlu0 %472
      %s475 = scalar_lea.vmem %s339, 4
      %476 = vst.msk [vmem:[%s475] sm:$0xf] %vm450, %v473
      %477 = vrot.lane.b32.xlu0 %v455, 56
      %v478 = vpop.permute.xlu0 %477
      %s480 = scalar_lea.vmem %s347, 4
      %481 = vst.msk [vmem:[%s480] sm:$0xf] %vm450, %v478
      %482 = vrot.lane.b32.xlu0 %v466, 112
      %v483 = vpop.permute.xlu0 %482
      %s485 = scalar_lea.vmem %s331, 8
      %486 = vst.msk [vmem:[%s485] sm:$0xf] %vm450, %v483
      %487 = vrot.lane.b32.xlu0 %v455, 80
      %v488 = vpop.permute.xlu0 %487
      %s490 = scalar_lea.vmem %s339, 8
      %491 = vst.msk [vmem:[%s490] sm:$0xf] %vm450, %v488
      %492 = vrot.lane.b32.xlu0 %v455, 48
      %v493 = vpop.permute.xlu0 %492
      %s495 = scalar_lea.vmem %s347, 8
      %496 = vst.msk [vmem:[%s495] sm:$0xf] %vm450, %v493
      %497 = vrot.lane.b32.xlu0 %v466, 104
      %v498 = vpop.permute.xlu0 %497
      %s500 = scalar_lea.vmem %s331, 12
      %501 = vst.msk [vmem:[%s500] sm:$0xf] %vm450, %v498
      %502 = vrot.lane.b32.xlu0 %v455, 72
      %v503 = vpop.permute.xlu0 %502
      %s505 = scalar_lea.vmem %s339, 12
      %506 = vst.msk [vmem:[%s505] sm:$0xf] %vm450, %v503
      %507 = vrot.lane.b32.xlu0 %v455, 40
      %v508 = vpop.permute.xlu0 %507
      %s510 = scalar_lea.vmem %s347, 12
      %511 = vst.msk [vmem:[%s510] sm:$0xf] %vm450, %v508
      %p512 = scmp.lt.s32.totalorder %s23, 1
      %s513 = scalar_select %p512, %s23, 1
      %p514 = scmp.lt.s32.totalorder %s24, 0
      %s515 = scalar_select %p514, %s24, 0
      %s516 = smul.addr %s513, 4
      %s517 = sadd.s32 %s515, %s516
      %s518 = smul.addr %s517, 4
      %s519 = scalar_lea.vmem %s5, %s518
      %p520 = scmp.lt.s32.totalorder %s23, 1
      %s521 = scalar_select %p520, %s23, 1
      %p522 = scmp.lt.s32.totalorder %s24, 0
      %s523 = scalar_select %p522, %s24, 0
      %s524 = smul.addr %s521, 4
      %s525 = sadd.s32 %s523, %s524
      %s526 = smul.addr %s525, 4
      %s527 = scalar_lea.vmem %s6, %s526
      %p528 = scmp.lt.s32.totalorder %s23, 1
      %s529 = scalar_select %p528, %s23, 1
      %p530 = scmp.lt.s32.totalorder %s24, 0
      %s531 = scalar_select %p530, %s24, 0
      %s532 = smul.addr %s529, 4
      %s533 = sadd.s32 %s531, %s532
      %s534 = smul.addr %s533, 4
      %s535 = scalar_lea.vmem %s7, %s534
      // Predicated region
      $region41: #{gpt_forward.5} parent=39 // pred_check
        %p536 = pneg %p163
      $region42: #{gpt_forward.5} parent=39 // pred_check_branch
        %538 = sbr.rel (%p536) target = $region44
      $region43: #{gpt_forward.5} parent=39 // pred_region
        _
      $region44: #{gpt_forward.5} parent=39 // pred_fallthru
        _
      // Predicated region
      $region45: #{gpt_forward.5} parent=39 // pred_check
        %p539 = pneg %p191
      $region46: #{gpt_forward.5} parent=39 // pred_check_branch
        %541 = sbr.rel (%p539) target = $region48
      $region47: #{gpt_forward.5} parent=39 // pred_region
        _
      $region48: #{gpt_forward.5} parent=39 // pred_fallthru
        _
      // Predicated region
      $region49: #{gpt_forward.5} parent=39 // pred_check
        %p542 = pneg %p219
      $region50: #{gpt_forward.5} parent=39 // pred_check_branch
        %544 = sbr.rel (%p542) target = $region52
      $region51: #{gpt_forward.5} parent=39 // pred_region
        _
      $region52: #{gpt_forward.5} parent=39 // pred_fallthru
        _
    $region40: #{gpt_forward.5} parent=5 // pred_fallthru
      _
    %p545 = scmp.le.s32.totalorder 2, %s14
    // Predicated region
    $region53: #{gpt_forward.5} parent=5 // pred_check
      %p546 = pneg %p545
    $region54: #{gpt_forward.5} parent=5 // pred_check_branch
      %548 = sbr.rel (%p546) target = $region56
    $region55: #{gpt_forward.5} parent=5 // pred_region
      %s549 = ssub.s32 %s14, 2
      // Predicated region
      $region57: #{gpt_forward.5} parent=55 // pred_check
        %p550 = pneg %p169
      $region58: #{gpt_forward.5} parent=55 // pred_check_branch
        %552 = sbr.rel (%p550) target = $region60
      $region59: #{gpt_forward.5} parent=55 // pred_region
        %p553 = scmp.lt.s32.totalorder %s25, 1
        %s554 = scalar_select %p553, %s25, 1
        %p555 = scmp.lt.s32.totalorder %s26, 0
        %s556 = scalar_select %p555, %s26, 0
        %s557 = smul.addr %s554, 4
        %s558 = sadd.s32 %s556, %s557
        %s559 = smul.addr %s558, 4
        %s560 = scalar_lea.vmem %s5, %s559
      $region60: #{gpt_forward.5} parent=55 // pred_fallthru
        _
      // Predicated region
      $region61: #{gpt_forward.5} parent=55 // pred_check
        %p561 = pneg %p197
      $region62: #{gpt_forward.5} parent=55 // pred_check_branch
        %563 = sbr.rel (%p561) target = $region64
      $region63: #{gpt_forward.5} parent=55 // pred_region
        %p564 = scmp.lt.s32.totalorder %s25, 1
        %s565 = scalar_select %p564, %s25, 1
        %p566 = scmp.lt.s32.totalorder %s26, 0
        %s567 = scalar_select %p566, %s26, 0
        %s568 = smul.addr %s565, 4
        %s569 = sadd.s32 %s567, %s568
        %s570 = smul.addr %s569, 4
        %s571 = scalar_lea.vmem %s6, %s570
      $region64: #{gpt_forward.5} parent=55 // pred_fallthru
        _
      // Predicated region
      $region65: #{gpt_forward.5} parent=55 // pred_check
        %p572 = pneg %p225
      $region66: #{gpt_forward.5} parent=55 // pred_check_branch
        %574 = sbr.rel (%p572) target = $region68
      $region67: #{gpt_forward.5} parent=55 // pred_region
        %p575 = scmp.lt.s32.totalorder %s25, 1
        %s576 = scalar_select %p575, %s25, 1
        %p577 = scmp.lt.s32.totalorder %s26, 0
        %s578 = scalar_select %p577, %s26, 0
        %s579 = smul.addr %s576, 4
        %s580 = sadd.s32 %s578, %s579
        %s581 = smul.addr %s580, 4
        %s582 = scalar_lea.vmem %s7, %s581
      $region68: #{gpt_forward.5} parent=55 // pred_fallthru
        _
    $region56: #{gpt_forward.5} parent=5 // pred_fallthru
      _
  $region6: #{gpt_forward.5} parent=0 // loop_footer
    %s18 = sadd.s32 1, %s14
  $region7: #{gpt_forward.5} parent=0 // loop_footer_branch
    %13 = sbr.rel target = $region3
  $region8: #{gpt_forward.5} parent=0 // loop_exit
    _

// kernel: gpt_forward.6
$region0: #{gpt_forward.6}
  #allocation0 [shape = 'u32[]', space=smem, size = 0x4, offset = 0x4, fixed_abs, tag = 'smem constant byte address 0x4 - core index']
  #allocation1 [shape = 'u32[144,128]{1,0:T(1,128)}', space=vmem, size = 0x12000, scoped, tag = 'internal scratch']
  %s0 = inlined_call_operand.vmem [shape: f32[2,8,32], index: 0, kind: input, shape index: {}]
  %s1 = inlined_call_operand.vmem [shape: bf16[2,4,8,8], index: 1, kind: input, shape index: {}]
  %s2 = inlined_call_operand.vmem [shape: bf16[2,4,8,8], index: 2, kind: input, shape index: {}]
  %s3 = inlined_call_operand.vmem [shape: bf16[2,4,8,8], index: 3, kind: input, shape index: {}]
  %s4 = inlined_call_operand.vmem [shape: bf16[32,32], index: 4, kind: input, shape index: {}]
  %s5 = inlined_call_operand.vmem [shape: f32[1,32], index: 5, kind: input, shape index: {}]
  %s6 = inlined_call_operand.vmem [shape: f32[1,32], index: 6, kind: input, shape index: {}]
  %s7 = inlined_call_operand.vmem [shape: f32[1,32], index: 7, kind: input, shape index: {}]
  %s8 = inlined_call_operand.vmem [shape: bf16[32,128], index: 8, kind: input, shape index: {}]
  %s9 = inlined_call_operand.vmem [shape: f32[1,128], index: 9, kind: input, shape index: {}]
  %s10 = inlined_call_operand.vmem [shape: bf16[128,32], index: 10, kind: input, shape index: {}]
  %s11 = inlined_call_operand.vmem [shape: f32[1,32], index: 11, kind: input, shape index: {}]
  %s12 = inlined_call_operand.vmem [shape: f32[2,8,32], index: 12, kind: output, shape index: {}]
  %s13 = sld [smem:[#allocation0]]
  $region81: #{gpt_forward.6} parent=0
    _
  %s15 = ssub.s32 1, %s13
  %s16 = scalar_select 0, %s15, %s13
  loop: start=0, step=1, limit=4
  $region2: #{gpt_forward.6} parent=0 // loop_pre_header
    _
  $region3: #{gpt_forward.6} parent=0 // loop_header
    %s18 = sphi 0, %s22
    %p19 = scmp.ge.s32.totalorder %s18, 4
    %s25 = sphi 0, %s37
    %s26 = sphi 0, %s33
    %s27 = sphi 0, %s25
    %s28 = sphi 0, %s26
    %s29 = sphi 0, %s27
    %s30 = sphi 0, %s28
    %s42 = sphi 0, %s44
    %s45 = sphi 0, %s42
    %s46 = sphi 0, %s45
    %s62 = sphi 0, %s46
    %s70 = sphi 0, %s72
    %s73 = sphi 0, %s70
    %s74 = sphi 0, %s73
    %s90 = sphi 0, %s74
    %s96 = sphi 0, %s98
    %s99 = sphi 0, %s96
    %s100 = sphi 0, %s99
    %s116 = sphi 0, %s100
    %s122 = sphi 0, %s124
    %s125 = sphi 0, %s122
    %s126 = sphi 0, %s125
    %s142 = sphi 0, %s126
    %s146 = sphi 0, %s146
    %s148 = sphi 0, %s146
    %s149 = sphi 0, %s148
    %s163 = sphi 0, %s149
    %s167 = sphi 0, %s167
    %s169 = sphi 0, %s167
    %s170 = sphi 0, %s169
    %s184 = sphi 0, %s170
    %s188 = sphi 0, %s188
    %s190 = sphi 0, %s188
    %s191 = sphi 0, %s190
    %s205 = sphi 0, %s191
    %s209 = sphi 0, %s209
    %s211 = sphi 0, %s209
    %s212 = sphi 0, %s211
    %s226 = sphi 0, %s212
    %s230 = sphi 0, %s230
    %s232 = sphi 0, %s230
    %s233 = sphi 0, %s232
    %s247 = sphi 0, %s233
    %s251 = sphi 0, %s251
    %s253 = sphi 0, %s251
    %s254 = sphi 0, %s253
    %s268 = sphi 0, %s254
    %s272 = sphi 0, %s272
    %s274 = sphi 0, %s272
    %s275 = sphi 0, %s274
    %s289 = sphi 0, %s275
    %s293 = sphi 0, %s293
    %s295 = sphi 0, %s293
    %s296 = sphi 0, %s295
    %s310 = sphi 0, %s296
    %s318 = sphi 0, %s320
    %s321 = sphi 0, %s318
    %s322 = sphi 0, %s321
    %s338 = sphi 0, %s322
  $region4: #{gpt_forward.6} parent=0 // loop_header_branch
    %21 = sbr.rel (%p19) target = $region8
  $region5: #{gpt_forward.6} parent=0 // loop_body
    %s23 = ssub.s32 %s18, 1
    %s24 = ssub.s32 %s18, 2
    %s31 = sadd.s32 1, %s26
    %p32 = scmp.ge.s32.totalorder %s31, 1
    %s33 = scalar_select %p32, 0, %s31
    %s34 = sadd.s32 1, %s25
    %s35 = scalar_select %p32, %s34, %s25
    %p36 = scmp.ge.s32.totalorder %s35, 2
    %s37 = scalar_select %p36, 0, %s35
    %s38 = ssub.s32 %s25, %s37
    %s39 = ssub.s32 %s26, %s33
    %s40 = sor.u32 %s38, %s39
    %p41 = scmp.eq.s32.totalorder %s40, 0
    %s43 = sadd.s32 %s42, 1
    %s44 = scalar_select %p41, %s42, %s43
    %p47 = pneg %p41
    %p48 = scmp.eq.s32.totalorder %s18, 1
    %p49 = por %p47, %p48
    %p50 = scmp.ne.s32.totalorder %s42, %s45
    %p51 = scmp.eq.s32.totalorder %s18, 0
    %p52 = por %p50, %p51
    %p53 = scmp.ne.s32.totalorder %s42, %s45
    %p54 = scmp.eq.s32.totalorder %s23, 1
    %p55 = por %p53, %p54
    %p56 = scmp.ne.s32.totalorder %s45, %s46
    %p57 = scmp.eq.s32.totalorder %s23, 0
    %p58 = por %p56, %p57
    %p59 = scmp.ne.s32.totalorder %s45, %s46
    %p60 = scmp.eq.s32.totalorder %s24, 1
    %p61 = por %p59, %p60
    %p63 = scmp.ne.s32.totalorder %s46, %s62
    %p64 = scmp.eq.s32.totalorder %s24, 0
    %p65 = por %p63, %p64
    %s66 = ssub.s32 %s25, %s37
    %s67 = ssub.s32 %s26, %s33
    %s68 = sor.u32 %s66, %s67
    %p69 = scmp.eq.s32.totalorder %s68, 0
    %s71 = sadd.s32 %s70, 1
    %s72 = scalar_select %p69, %s70, %s71
    %p75 = pneg %p69
    %p76 = scmp.eq.s32.totalorder %s18, 1
    %p77 = por %p75, %p76
    %p78 = scmp.ne.s32.totalorder %s70, %s73
    %p79 = scmp.eq.s32.totalorder %s18, 0
    %p80 = por %p78, %p79
    %p81 = scmp.ne.s32.totalorder %s70, %s73
    %p82 = scmp.eq.s32.totalorder %s23, 1
    %p83 = por %p81, %p82
    %p84 = scmp.ne.s32.totalorder %s73, %s74
    %p85 = scmp.eq.s32.totalorder %s23, 0
    %p86 = por %p84, %p85
    %p87 = scmp.ne.s32.totalorder %s73, %s74
    %p88 = scmp.eq.s32.totalorder %s24, 1
    %p89 = por %p87, %p88
    %p91 = scmp.ne.s32.totalorder %s74, %s90
    %p92 = scmp.eq.s32.totalorder %s24, 0
    %p93 = por %p91, %p92
    %s94 = ssub.s32 %s25, %s37
    %p95 = scmp.eq.s32.totalorder %s94, 0
    %s97 = sadd.s32 %s96, 1
    %s98 = scalar_select %p95, %s96, %s97
    %p101 = pneg %p95
    %p102 = scmp.eq.s32.totalorder %s18, 1
    %p103 = por %p101, %p102
    %p104 = scmp.ne.s32.totalorder %s96, %s99
    %p105 = scmp.eq.s32.totalorder %s18, 0
    %p106 = por %p104, %p105
    %p107 = scmp.ne.s32.totalorder %s96, %s99
    %p108 = scmp.eq.s32.totalorder %s23, 1
    %p109 = por %p107, %p108
    %p110 = scmp.ne.s32.totalorder %s99, %s100
    %p111 = scmp.eq.s32.totalorder %s23, 0
    %p112 = por %p110, %p111
    %p113 = scmp.ne.s32.totalorder %s99, %s100
    %p114 = scmp.eq.s32.totalorder %s24, 1
    %p115 = por %p113, %p114
    %p117 = scmp.ne.s32.totalorder %s100, %s116
    %p118 = scmp.eq.s32.totalorder %s24, 0
    %p119 = por %p117, %p118
    %s120 = ssub.s32 %s25, %s37
    %p121 = scmp.eq.s32.totalorder %s120, 0
    %s123 = sadd.s32 %s122, 1
    %s124 = scalar_select %p121, %s122, %s123
    %p127 = pneg %p121
    %p128 = scmp.eq.s32.totalorder %s18, 1
    %p129 = por %p127, %p128
    %p130 = scmp.ne.s32.totalorder %s122, %s125
    %p131 = scmp.eq.s32.totalorder %s18, 0
    %p132 = por %p130, %p131
    %p133 = scmp.ne.s32.totalorder %s122, %s125
    %p134 = scmp.eq.s32.totalorder %s23, 1
    %p135 = por %p133, %p134
    %p136 = scmp.ne.s32.totalorder %s125, %s126
    %p137 = scmp.eq.s32.totalorder %s23, 0
    %p138 = por %p136, %p137
    %p139 = scmp.ne.s32.totalorder %s125, %s126
    %p140 = scmp.eq.s32.totalorder %s24, 1
    %p141 = por %p139, %p140
    %p143 = scmp.ne.s32.totalorder %s126, %s142
    %p144 = scmp.eq.s32.totalorder %s24, 0
    %p145 = por %p143, %p144
    %s147 = sadd.s32 %s146, 1
    %p150 = scmp.eq.s32.totalorder %s18, 1
    %p151 = scmp.ne.s32.totalorder %s146, %s148
    %p152 = scmp.eq.s32.totalorder %s18, 0
    %p153 = por %p151, %p152
    %p154 = scmp.ne.s32.totalorder %s146, %s148
    %p155 = scmp.eq.s32.totalorder %s23, 1
    %p156 = por %p154, %p155
    %p157 = scmp.ne.s32.totalorder %s148, %s149
    %p158 = scmp.eq.s32.totalorder %s23, 0
    %p159 = por %p157, %p158
    %p160 = scmp.ne.s32.totalorder %s148, %s149
    %p161 = scmp.eq.s32.totalorder %s24, 1
    %p162 = por %p160, %p161
    %p164 = scmp.ne.s32.totalorder %s149, %s163
    %p165 = scmp.eq.s32.totalorder %s24, 0
    %p166 = por %p164, %p165
    %s168 = sadd.s32 %s167, 1
    %p171 = scmp.eq.s32.totalorder %s18, 1
    %p172 = scmp.ne.s32.totalorder %s167, %s169
    %p173 = scmp.eq.s32.totalorder %s18, 0
    %p174 = por %p172, %p173
    %p175 = scmp.ne.s32.totalorder %s167, %s169
    %p176 = scmp.eq.s32.totalorder %s23, 1
    %p177 = por %p175, %p176
    %p178 = scmp.ne.s32.totalorder %s169, %s170
    %p179 = scmp.eq.s32.totalorder %s23, 0
    %p180 = por %p178, %p179
    %p181 = scmp.ne.s32.totalorder %s169, %s170
    %p182 = scmp.eq.s32.totalorder %s24, 1
    %p183 = por %p181, %p182
    %p185 = scmp.ne.s32.totalorder %s170, %s184
    %p186 = scmp.eq.s32.totalorder %s24, 0
    %p187 = por %p185, %p186
    %s189 = sadd.s32 %s188, 1
    %p192 = scmp.eq.s32.totalorder %s18, 1
    %p193 = scmp.ne.s32.totalorder %s188, %s190
    %p194 = scmp.eq.s32.totalorder %s18, 0
    %p195 = por %p193, %p194
    %p196 = scmp.ne.s32.totalorder %s188, %s190
    %p197 = scmp.eq.s32.totalorder %s23, 1
    %p198 = por %p196, %p197
    %p199 = scmp.ne.s32.totalorder %s190, %s191
    %p200 = scmp.eq.s32.totalorder %s23, 0
    %p201 = por %p199, %p200
    %p202 = scmp.ne.s32.totalorder %s190, %s191
    %p203 = scmp.eq.s32.totalorder %s24, 1
    %p204 = por %p202, %p203
    %p206 = scmp.ne.s32.totalorder %s191, %s205
    %p207 = scmp.eq.s32.totalorder %s24, 0
    %p208 = por %p206, %p207
    %s210 = sadd.s32 %s209, 1
    %p213 = scmp.eq.s32.totalorder %s18, 1
    %p214 = scmp.ne.s32.totalorder %s209, %s211
    %p215 = scmp.eq.s32.totalorder %s18, 0
    %p216 = por %p214, %p215
    %p217 = scmp.ne.s32.totalorder %s209, %s211
    %p218 = scmp.eq.s32.totalorder %s23, 1
    %p219 = por %p217, %p218
    %p220 = scmp.ne.s32.totalorder %s211, %s212
    %p221 = scmp.eq.s32.totalorder %s23, 0
    %p222 = por %p220, %p221
    %p223 = scmp.ne.s32.totalorder %s211, %s212
    %p224 = scmp.eq.s32.totalorder %s24, 1
    %p225 = por %p223, %p224
    %p227 = scmp.ne.s32.totalorder %s212, %s226
    %p228 = scmp.eq.s32.totalorder %s24, 0
    %p229 = por %p227, %p228
    %s231 = sadd.s32 %s230, 1
    %p234 = scmp.eq.s32.totalorder %s18, 1
    %p235 = scmp.ne.s32.totalorder %s230, %s232
    %p236 = scmp.eq.s32.totalorder %s18, 0
    %p237 = por %p235, %p236
    %p238 = scmp.ne.s32.totalorder %s230, %s232
    %p239 = scmp.eq.s32.totalorder %s23, 1
    %p240 = por %p238, %p239
    %p241 = scmp.ne.s32.totalorder %s232, %s233
    %p242 = scmp.eq.s32.totalorder %s23, 0
    %p243 = por %p241, %p242
    %p244 = scmp.ne.s32.totalorder %s232, %s233
    %p245 = scmp.eq.s32.totalorder %s24, 1
    %p246 = por %p244, %p245
    %p248 = scmp.ne.s32.totalorder %s233, %s247
    %p249 = scmp.eq.s32.totalorder %s24, 0
    %p250 = por %p248, %p249
    %s252 = sadd.s32 %s251, 1
    %p255 = scmp.eq.s32.totalorder %s18, 1
    %p256 = scmp.ne.s32.totalorder %s251, %s253
    %p257 = scmp.eq.s32.totalorder %s18, 0
    %p258 = por %p256, %p257
    %p259 = scmp.ne.s32.totalorder %s251, %s253
    %p260 = scmp.eq.s32.totalorder %s23, 1
    %p261 = por %p259, %p260
    %p262 = scmp.ne.s32.totalorder %s253, %s254
    %p263 = scmp.eq.s32.totalorder %s23, 0
    %p264 = por %p262, %p263
    %p265 = scmp.ne.s32.totalorder %s253, %s254
    %p266 = scmp.eq.s32.totalorder %s24, 1
    %p267 = por %p265, %p266
    %p269 = scmp.ne.s32.totalorder %s254, %s268
    %p270 = scmp.eq.s32.totalorder %s24, 0
    %p271 = por %p269, %p270
    %s273 = sadd.s32 %s272, 1
    %p276 = scmp.eq.s32.totalorder %s18, 1
    %p277 = scmp.ne.s32.totalorder %s272, %s274
    %p278 = scmp.eq.s32.totalorder %s18, 0
    %p279 = por %p277, %p278
    %p280 = scmp.ne.s32.totalorder %s272, %s274
    %p281 = scmp.eq.s32.totalorder %s23, 1
    %p282 = por %p280, %p281
    %p283 = scmp.ne.s32.totalorder %s274, %s275
    %p284 = scmp.eq.s32.totalorder %s23, 0
    %p285 = por %p283, %p284
    %p286 = scmp.ne.s32.totalorder %s274, %s275
    %p287 = scmp.eq.s32.totalorder %s24, 1
    %p288 = por %p286, %p287
    %p290 = scmp.ne.s32.totalorder %s275, %s289
    %p291 = scmp.eq.s32.totalorder %s24, 0
    %p292 = por %p290, %p291
    %s294 = sadd.s32 %s293, 1
    %p297 = scmp.eq.s32.totalorder %s18, 1
    %p298 = scmp.ne.s32.totalorder %s293, %s295
    %p299 = scmp.eq.s32.totalorder %s18, 0
    %p300 = por %p298, %p299
    %p301 = scmp.ne.s32.totalorder %s293, %s295
    %p302 = scmp.eq.s32.totalorder %s23, 1
    %p303 = por %p301, %p302
    %p304 = scmp.ne.s32.totalorder %s295, %s296
    %p305 = scmp.eq.s32.totalorder %s23, 0
    %p306 = por %p304, %p305
    %p307 = scmp.ne.s32.totalorder %s295, %s296
    %p308 = scmp.eq.s32.totalorder %s24, 1
    %p309 = por %p307, %p308
    %p311 = scmp.ne.s32.totalorder %s296, %s310
    %p312 = scmp.eq.s32.totalorder %s24, 0
    %p313 = por %p311, %p312
    %s314 = ssub.s32 %s25, %s37
    %s315 = ssub.s32 %s26, %s33
    %s316 = sor.u32 %s314, %s315
    %p317 = scmp.eq.s32.totalorder %s316, 0
    %s319 = sadd.s32 %s318, 1
    %s320 = scalar_select %p317, %s318, %s319
    %p323 = pneg %p317
    %p324 = scmp.eq.s32.totalorder %s18, 1
    %p325 = por %p323, %p324
    %p326 = scmp.ne.s32.totalorder %s318, %s321
    %p327 = scmp.eq.s32.totalorder %s18, 0
    %p328 = por %p326, %p327
    %p329 = scmp.ne.s32.totalorder %s318, %s321
    %p330 = scmp.eq.s32.totalorder %s23, 1
    %p331 = por %p329, %p330
    %p332 = scmp.ne.s32.totalorder %s321, %s322
    %p333 = scmp.eq.s32.totalorder %s23, 0
    %p334 = por %p332, %p333
    %p335 = scmp.ne.s32.totalorder %s321, %s322
    %p336 = scmp.eq.s32.totalorder %s24, 1
    %p337 = por %p335, %p336
    %p339 = scmp.ne.s32.totalorder %s322, %s338
    %p340 = scmp.eq.s32.totalorder %s24, 0
    %p341 = por %p339, %p340
    %p342 = scmp.le.s32.totalorder 1, %s18
    %p343 = scmp.lt.s32.totalorder %s18, 3
    %p344 = pnand %p342, %p343
    %p345 = pneg %p344
    // Predicated region
    $region9: #{gpt_forward.6} parent=5 // pred_check
      _
    $region10: #{gpt_forward.6} parent=5 // pred_check_branch
      %347 = sbr.rel (%p344) target = $region12
    $region11: #{gpt_forward.6} parent=5 // pred_region
      %s348 = ssub.s32 %s18, 1
      // Predicated region
      $region13: #{gpt_forward.6} parent=11 // pred_check
        %p349 = pneg %p112
      $region14: #{gpt_forward.6} parent=11 // pred_check_branch
        %351 = sbr.rel (%p349) target = $region16
      $region15: #{gpt_forward.6} parent=11 // pred_region
        %p352 = scmp.lt.s32.totalorder %s27, 1
        %s353 = scalar_select %p352, %s27, 1
        %s354 = smul.addr %s353, 4
        %s355 = smul.addr %s354, 4
        %s356 = scalar_lea.vmem %s2, %s355
      $region16: #{gpt_forward.6} parent=11 // pred_fallthru
        _
      // Predicated region
      $region17: #{gpt_forward.6} parent=11 // pred_check
        %p357 = pneg %p138
      $region18: #{gpt_forward.6} parent=11 // pred_check_branch
        %359 = sbr.rel (%p357) target = $region20
      $region19: #{gpt_forward.6} parent=11 // pred_region
        %p360 = scmp.lt.s32.totalorder %s27, 1
        %s361 = scalar_select %p360, %s27, 1
        %s362 = smul.addr %s361, 4
        %s363 = smul.addr %s362, 4
        %s364 = scalar_lea.vmem %s3, %s363
      $region20: #{gpt_forward.6} parent=11 // pred_fallthru
        _
      // Predicated region
      $region21: #{gpt_forward.6} parent=11 // pred_check
        %p365 = pneg %p159
      $region22: #{gpt_forward.6} parent=11 // pred_check_branch
        %367 = sbr.rel (%p365) target = $region24
      $region23: #{gpt_forward.6} parent=11 // pred_region
        _
      $region24: #{gpt_forward.6} parent=11 // pred_fallthru
        _
      // Predicated region
      $region25: #{gpt_forward.6} parent=11 // pred_check
        %p368 = pneg %p180
      $region26: #{gpt_forward.6} parent=11 // pred_check_branch
        %370 = sbr.rel (%p368) target = $region28
      $region27: #{gpt_forward.6} parent=11 // pred_region
        _
      $region28: #{gpt_forward.6} parent=11 // pred_fallthru
        _
      // Predicated region
      $region29: #{gpt_forward.6} parent=11 // pred_check
        %p371 = pneg %p201
      $region30: #{gpt_forward.6} parent=11 // pred_check_branch
        %373 = sbr.rel (%p371) target = $region32
      $region31: #{gpt_forward.6} parent=11 // pred_region
        _
      $region32: #{gpt_forward.6} parent=11 // pred_fallthru
        _
      // Predicated region
      $region33: #{gpt_forward.6} parent=11 // pred_check
        %p374 = pneg %p222
      $region34: #{gpt_forward.6} parent=11 // pred_check_branch
        %376 = sbr.rel (%p374) target = $region36
      $region35: #{gpt_forward.6} parent=11 // pred_region
        _
      $region36: #{gpt_forward.6} parent=11 // pred_fallthru
        _
      // Predicated region
      $region37: #{gpt_forward.6} parent=11 // pred_check
        %p377 = pneg %p243
      $region38: #{gpt_forward.6} parent=11 // pred_check_branch
        %379 = sbr.rel (%p377) target = $region40
      $region39: #{gpt_forward.6} parent=11 // pred_region
        _
      $region40: #{gpt_forward.6} parent=11 // pred_fallthru
        _
      // Predicated region
      $region41: #{gpt_forward.6} parent=11 // pred_check
        %p380 = pneg %p264
      $region42: #{gpt_forward.6} parent=11 // pred_check_branch
        %382 = sbr.rel (%p380) target = $region44
      $region43: #{gpt_forward.6} parent=11 // pred_region
        _
      $region44: #{gpt_forward.6} parent=11 // pred_fallthru
        _
      // Predicated region
      $region45: #{gpt_forward.6} parent=11 // pred_check
        %p383 = pneg %p285
      $region46: #{gpt_forward.6} parent=11 // pred_check_branch
        %385 = sbr.rel (%p383) target = $region48
      $region47: #{gpt_forward.6} parent=11 // pred_region
        _
      $region48: #{gpt_forward.6} parent=11 // pred_fallthru
        _
      // Predicated region
      $region49: #{gpt_forward.6} parent=11 // pred_check
        %p386 = pneg %p306
      $region50: #{gpt_forward.6} parent=11 // pred_check_branch
        %388 = sbr.rel (%p386) target = $region52
      $region51: #{gpt_forward.6} parent=11 // pred_region
        _
      $region52: #{gpt_forward.6} parent=11 // pred_fallthru
        _
    $region12: #{gpt_forward.6} parent=5 // pred_fallthru
      _
    %p389 = scmp.lt.s32.totalorder %s18, 2
    // Predicated region
    $region53: #{gpt_forward.6} parent=5 // pred_check
      %p390 = pneg %p389
    $region54: #{gpt_forward.6} parent=5 // pred_check_branch
      %392 = sbr.rel (%p390) target = $region56
    $region55: #{gpt_forward.6} parent=5 // pred_region
      // Predicated region
      $region57: #{gpt_forward.6} parent=55 // pred_check
        %p393 = pneg %p52
      $region58: #{gpt_forward.6} parent=55 // pred_check_branch
        %395 = sbr.rel (%p393) target = $region60
      $region59: #{gpt_forward.6} parent=55 // pred_region
        %p396 = scmp.lt.s32.totalorder %s25, 1
        %s397 = scalar_select %p396, %s25, 1
        %p398 = scmp.lt.s32.totalorder %s26, 0
        %s399 = scalar_select %p398, %s26, 0
        %s400 = sadd.s32 %s399, %s397
        %s401 = smul.addr %s400, 8
        %s402 = scalar_lea.vmem %s0, %s401
      $region60: #{gpt_forward.6} parent=55 // pred_fallthru
        _
      // Predicated region
      $region61: #{gpt_forward.6} parent=55 // pred_check
        %p403 = pneg %p80
      $region62: #{gpt_forward.6} parent=55 // pred_check_branch
        %405 = sbr.rel (%p403) target = $region64
      $region63: #{gpt_forward.6} parent=55 // pred_region
        %p406 = scmp.lt.s32.totalorder %s25, 1
        %s407 = scalar_select %p406, %s25, 1
        %p408 = scmp.lt.s32.totalorder %s26, 0
        %s409 = scalar_select %p408, %s26, 0
        %s410 = smul.addr %s407, 4
        %s411 = sadd.s32 %s409, %s410
        %s412 = smul.addr %s411, 4
        %s413 = scalar_lea.vmem %s1, %s412
      $region64: #{gpt_forward.6} parent=55 // pred_fallthru
        _
    $region56: #{gpt_forward.6} parent=5 // pred_fallthru
      _
    %p414 = scmp.le.s32.totalorder 1, %s18
    %p415 = scmp.lt.s32.totalorder %s18, 3
    %p416 = pnand %p414, %p415
    %p417 = pneg %p416
    // Predicated region
    $region65: #{gpt_forward.6} parent=5 // pred_check
      _
    $region66: #{gpt_forward.6} parent=5 // pred_check_branch
      %419 = sbr.rel (%p416) target = $region68
    $region67: #{gpt_forward.6} parent=5 // pred_region
      %s420 = ssub.s32 %s18, 1
      %p421 = scmp.lt.s32.totalorder %s27, 1
      %s422 = scalar_select %p421, %s27, 1
      %p423 = scmp.lt.s32.totalorder %s28, 0
      %s424 = scalar_select %p423, %s28, 0
      %s425 = sadd.s32 %s424, %s422
      %s426 = smul.addr %s425, 8
      %s427 = scalar_lea.vmem %s0, %s426
      %p428 = pneg %p58
      %p429 = pneg %p55
      %p430 = scmp.lt.s32.totalorder %s27, 1
      %s431 = scalar_select %p430, %s27, 1
      %p432 = scmp.lt.s32.totalorder %s28, 0
      %s433 = scalar_select %p432, %s28, 0
      %s434 = smul.addr %s431, 4
      %s435 = sadd.s32 %s433, %s434
      %s436 = smul.addr %s435, 4
      %s437 = scalar_lea.vmem %s1, %s436
      %p438 = pneg %p86
      %p439 = pneg %p83
      %p440 = scmp.lt.s32.totalorder %s27, 1
      %s441 = scalar_select %p440, %s27, 1
      %s442 = smul.addr %s441, 4
      %s443 = smul.addr %s442, 4
      %s444 = scalar_lea.vmem %s2, %s443
      %p445 = pneg %p112
      %p446 = pneg %p109
      %p447 = scmp.lt.s32.totalorder %s27, 1
      %s448 = scalar_select %p447, %s27, 1
      %s449 = smul.addr %s448, 4
      %s450 = smul.addr %s449, 4
      %s451 = scalar_lea.vmem %s3, %s450
      %p452 = pneg %p138
      %p453 = pneg %p135
      %p454 = pneg %p159
      %p455 = pneg %p156
      %p456 = pneg %p180
      %p457 = pneg %p177
      %p458 = pneg %p201
      %p459 = pneg %p198
      %p460 = pneg %p222
      %p461 = pneg %p219
      %p462 = pneg %p243
      %p463 = pneg %p240
      %p464 = pneg %p264
      %p465 = pneg %p261
      %p466 = pneg %p285
      %p467 = pneg %p282
      %p468 = pneg %p306
      %p469 = pneg %p303
      %p470 = pneg %p334
      %p471 = pneg %p331
      %p472 = scmp.lt.s32.totalorder %s27, 1
      %s473 = scalar_select %p472, %s27, 1
      %p474 = scmp.lt.s32.totalorder %s28, 0
      %s475 = scalar_select %p474, %s28, 0
      %s476 = sadd.s32 %s475, %s473
      %s477 = smul.addr %s476, 8
      %s478 = scalar_lea.vmem %s12, %s477
      %p479 = scmp.lt.s32.totalorder %s27, 1
      %s480 = scalar_select %p479, %s27, 1
      %p481 = scmp.lt.s32.totalorder %s28, 0
      %s482 = scalar_select %p481, %s28, 0
      %s483 = sadd.s32 %s482, %s480
      %s484 = smul.addr %s483, 8
      %s485 = scalar_lea.vmem %s0, %s484
      %p486 = scmp.lt.s32.totalorder %s27, 1
      %s487 = scalar_select %p486, %s27, 1
      %p488 = scmp.lt.s32.totalorder %s28, 0
      %s489 = scalar_select %p488, %s28, 0
      %s490 = smul.addr %s487, 4
      %s491 = sadd.s32 %s489, %s490
      %s492 = smul.addr %s491, 4
      %s493 = scalar_lea.vmem %s1, %s492
      %p494 = scmp.lt.s32.totalorder %s27, 1
      %s495 = scalar_select %p494, %s27, 1
      %s496 = smul.addr %s495, 4
      %s497 = smul.addr %s496, 4
      %s498 = scalar_lea.vmem %s2, %s497
      %p499 = scmp.lt.s32.totalorder %s27, 1
      %s500 = scalar_select %p499, %s27, 1
      %s501 = smul.addr %s500, 4
      %s502 = smul.addr %s501, 4
      %s503 = scalar_lea.vmem %s3, %s502
      %p504 = scmp.lt.s32.totalorder %s27, 1
      %s505 = scalar_select %p504, %s27, 1
      %p506 = scmp.lt.s32.totalorder %s28, 0
      %s507 = scalar_select %p506, %s28, 0
      %s508 = sadd.s32 %s507, %s505
      %s509 = smul.addr %s508, 8
      %s510 = scalar_lea.vmem %s12, %s509
      %v512 = vld [vmem:[%s485] sm:$0xff]
      %v513 = vld [vmem:[%s493] sm:$0xf]
      %v514 = vld [vmem:[%s493 + $0x4] sm:$0xf]
      %v515 = vld [vmem:[%s493 + $0x8] sm:$0xf]
      %v516 = vld [vmem:[%s493 + $0xc] sm:$0xf]
      %v517 = vld [vmem:[%s498] sm:$0xf]
      %v518 = vld [vmem:[%s498 + $0x4] sm:$0xf]
      %v519 = vld [vmem:[%s498 + $0x8] sm:$0xf]
      %v520 = vld [vmem:[%s498 + $0xc] sm:$0xf]
      %v521 = vld [vmem:[%s503] sm:$0xf]
      %v522 = vld [vmem:[%s503 + $0x4] sm:$0xf]
      %v523 = vld [vmem:[%s503 + $0x8] sm:$0xf]
      %v524 = vld [vmem:[%s503 + $0xc] sm:$0xf]
      %s525 = smul.u32 %s28, 8
      %v526 = vlaneseq
      %v527 = vshrl.u32 %v526, 7
      %v528 = vstv %s525
      %v529 = vadd.s32 %v527, %v528
      %v530 = vlaneseq
      %v531 = vand.u32 %v530, 127
      %vm532 = vcmp.ge.s32.totalorder %v529, %v531
      %v533 = vsel %vm532, 0.0, -1e+30
      %vm534 = vcmask 64512
      %v536 = vsel %vm534, %v513, 0
      %v539 = vsel %vm534, %v517, 0
      %541 = vmatprep.subr.bf16.mxu0 0
      %542 = vmatpush1.bf16.xpose.msra.mxu0 %v539
      %543 = vmatprep.subr.bf16.mxu0 0
      %544 = vmatpush1.bf16.xpose.msra.mxu0 0
      %545 = vmatprep.subr.bf16.mxu0 0
      %546 = vmatpush1.bf16.xpose.msra.mxu0 0
      %547 = vmatprep.subr.bf16.mxu0 0
      %548 = vmatpush1.bf16.xpose.msra.mxu0 0
      %549 = vmatprep.subr.bf16.mxu0 0
      %550 = vmatpush1.bf16.xpose.msra.mxu0 0
      %551 = vmatprep.subr.bf16.mxu0 0
      %552 = vmatpush1.bf16.xpose.msra.mxu0 0
      %553 = vmatprep.subr.bf16.mxu0 0
      %554 = vmatpush1.bf16.xpose.msra.mxu0 0
      %555 = vmatprep.subr.bf16.mxu0 0
      %556 = vmatpush1.bf16.xpose.msra.mxu0 0
      %557 = vmatprep.subr.bf16.mxu0 0
      %558 = vmatpush1.bf16.xpose.msra.mxu0 0
      %559 = vmatprep.subr.bf16.mxu0 0
      %560 = vmatpush1.bf16.xpose.msra.mxu0 0
      %561 = vmatprep.subr.bf16.mxu0 0
      %562 = vmatpush1.bf16.xpose.msra.mxu0 0
      %563 = vmatprep.subr.bf16.mxu0 0
      %564 = vmatpush1.bf16.xpose.msra.mxu0 0
      %565 = vmatprep.subr.bf16.mxu0 0
      %566 = vmatpush1.bf16.xpose.msra.mxu0 0
      %567 = vmatprep.subr.bf16.mxu0 0
      %568 = vmatpush1.bf16.xpose.msra.mxu0 0
      %569 = vmatprep.subr.bf16.mxu0 0
      %570 = vmatpush1.bf16.xpose.msra.mxu0 0
      %571 = vmatprep.subr.bf16.mxu0 0
      %572 = vmatpush1.bf16.xpose.msra.mxu0 0
      %573 = vmatprep.mubr.bf16.mxu0 0
      %574 = vmatmul.mubr.bf16.gmra.mrb[0].mxu0 %v536
      %v575 = vpop.f32.mrb[0].mxu0
      %v576 = vadd.f32 %v533, %v575
      %v577 = vpop.f32.mrb[0].mxu0
      %v578 = vpop.f32.mrb[0].mxu0
      %v579 = vpop.f32.mrb[0].mxu0
      %580 = vdwg.mxu0
      %v582 = vsel %vm534, %v514, 0
      %v585 = vsel %vm534, %v518, 0
      %587 = vmatprep.subr.bf16.mxu0 0
      %588 = vmatpush1.bf16.xpose.msra.mxu0 %v585
      %589 = vmatprep.subr.bf16.mxu0 0
      %590 = vmatpush1.bf16.xpose.msra.mxu0 0
      %591 = vmatprep.subr.bf16.mxu0 0
      %592 = vmatpush1.bf16.xpose.msra.mxu0 0
      %593 = vmatprep.subr.bf16.mxu0 0
      %594 = vmatpush1.bf16.xpose.msra.mxu0 0
      %595 = vmatprep.subr.bf16.mxu0 0
      %596 = vmatpush1.bf16.xpose.msra.mxu0 0
      %597 = vmatprep.subr.bf16.mxu0 0
      %598 = vmatpush1.bf16.xpose.msra.mxu0 0
      %599 = vmatprep.subr.bf16.mxu0 0
      %600 = vmatpush1.bf16.xpose.msra.mxu0 0
      %601 = vmatprep.subr.bf16.mxu0 0
      %602 = vmatpush1.bf16.xpose.msra.mxu0 0
      %603 = vmatprep.subr.bf16.mxu0 0
      %604 = vmatpush1.bf16.xpose.msra.mxu0 0
      %605 = vmatprep.subr.bf16.mxu0 0
      %606 = vmatpush1.bf16.xpose.msra.mxu0 0
      %607 = vmatprep.subr.bf16.mxu0 0
      %608 = vmatpush1.bf16.xpose.msra.mxu0 0
      %609 = vmatprep.subr.bf16.mxu0 0
      %610 = vmatpush1.bf16.xpose.msra.mxu0 0
      %611 = vmatprep.subr.bf16.mxu0 0
      %612 = vmatpush1.bf16.xpose.msra.mxu0 0
      %613 = vmatprep.subr.bf16.mxu0 0
      %614 = vmatpush1.bf16.xpose.msra.mxu0 0
      %615 = vmatprep.subr.bf16.mxu0 0
      %616 = vmatpush1.bf16.xpose.msra.mxu0 0
      %617 = vmatprep.subr.bf16.mxu0 0
      %618 = vmatpush1.bf16.xpose.msra.mxu0 0
      %619 = vmatprep.mubr.bf16.mxu0 0
      %620 = vmatmul.mubr.bf16.gmra.mrb[0].mxu0 %v582
      %v621 = vpop.f32.mrb[0].mxu0
      %v622 = vadd.f32 %v533, %v621
      %v623 = vpop.f32.mrb[0].mxu0
      %v624 = vpop.f32.mrb[0].mxu0
      %v625 = vpop.f32.mrb[0].mxu0
      %626 = vdwg.mxu0
      %v628 = vsel %vm534, %v515, 0
      %v631 = vsel %vm534, %v519, 0
      %633 = vmatprep.subr.bf16.mxu0 0
      %634 = vmatpush1.bf16.xpose.msra.mxu0 %v631
      %635 = vmatprep.subr.bf16.mxu0 0
      %636 = vmatpush1.bf16.xpose.msra.mxu0 0
      %637 = vmatprep.subr.bf16.mxu0 0
      %638 = vmatpush1.bf16.xpose.msra.mxu0 0
      %639 = vmatprep.subr.bf16.mxu0 0
      %640 = vmatpush1.bf16.xpose.msra.mxu0 0
      %641 = vmatprep.subr.bf16.mxu0 0
      %642 = vmatpush1.bf16.xpose.msra.mxu0 0
      %643 = vmatprep.subr.bf16.mxu0 0
      %644 = vmatpush1.bf16.xpose.msra.mxu0 0
      %645 = vmatprep.subr.bf16.mxu0 0
      %646 = vmatpush1.bf16.xpose.msra.mxu0 0
      %647 = vmatprep.subr.bf16.mxu0 0
      %648 = vmatpush1.bf16.xpose.msra.mxu0 0
      %649 = vmatprep.subr.bf16.mxu0 0
      %650 = vmatpush1.bf16.xpose.msra.mxu0 0
      %651 = vmatprep.subr.bf16.mxu0 0
      %652 = vmatpush1.bf16.xpose.msra.mxu0 0
      %653 = vmatprep.subr.bf16.mxu0 0
      %654 = vmatpush1.bf16.xpose.msra.mxu0 0
      %655 = vmatprep.subr.bf16.mxu0 0
      %656 = vmatpush1.bf16.xpose.msra.mxu0 0
      %657 = vmatprep.subr.bf16.mxu0 0
      %658 = vmatpush1.bf16.xpose.msra.mxu0 0
      %659 = vmatprep.subr.bf16.mxu0 0
      %660 = vmatpush1.bf16.xpose.msra.mxu0 0
      %661 = vmatprep.subr.bf16.mxu0 0
      %662 = vmatpush1.bf16.xpose.msra.mxu0 0
      %663 = vmatprep.subr.bf16.mxu0 0
      %664 = vmatpush1.bf16.xpose.msra.mxu0 0
      %665 = vmatprep.mubr.bf16.mxu0 0
      %666 = vmatmul.mubr.bf16.gmra.mrb[0].mxu0 %v628
      %v667 = vpop.f32.mrb[0].mxu0
      %v668 = vadd.f32 %v533, %v667
      %v669 = vpop.f32.mrb[0].mxu0
      %v670 = vpop.f32.mrb[0].mxu0
      %v671 = vpop.f32.mrb[0].mxu0
      %672 = vdwg.mxu0
      %v674 = vsel %vm534, %v516, 0
      %v677 = vsel %vm534, %v520, 0
      %679 = vmatprep.subr.bf16.mxu0 0
      %680 = vmatpush1.bf16.xpose.msra.mxu0 %v677
      %681 = vmatprep.subr.bf16.mxu0 0
      %682 = vmatpush1.bf16.xpose.msra.mxu0 0
      %683 = vmatprep.subr.bf16.mxu0 0
      %684 = vmatpush1.bf16.xpose.msra.mxu0 0
      %685 = vmatprep.subr.bf16.mxu0 0
      %686 = vmatpush1.bf16.xpose.msra.mxu0 0
      %687 = vmatprep.subr.bf16.mxu0 0
      %688 = vmatpush1.bf16.xpose.msra.mxu0 0
      %689 = vmatprep.subr.bf16.mxu0 0
      %690 = vmatpush1.bf16.xpose.msra.mxu0 0
      %691 = vmatprep.subr.bf16.mxu0 0
      %692 = vmatpush1.bf16.xpose.msra.mxu0 0
      %693 = vmatprep.subr.bf16.mxu0 0
      %694 = vmatpush1.bf16.xpose.msra.mxu0 0
      %695 = vmatprep.subr.bf16.mxu0 0
      %696 = vmatpush1.bf16.xpose.msra.mxu0 0
      %697 = vmatprep.subr.bf16.mxu0 0
      %698 = vmatpush1.bf16.xpose.msra.mxu0 0
      %699 = vmatprep.subr.bf16.mxu0 0
      %700 = vmatpush1.bf16.xpose.msra.mxu0 0
      %701 = vmatprep.subr.bf16.mxu0 0
      %702 = vmatpush1.bf16.xpose.msra.mxu0 0
      %703 = vmatprep.subr.bf16.mxu0 0
      %704 = vmatpush1.bf16.xpose.msra.mxu0 0
      %705 = vmatprep.subr.bf16.mxu0 0
      %706 = vmatpush1.bf16.xpose.msra.mxu0 0
      %707 = vmatprep.subr.bf16.mxu0 0
      %708 = vmatpush1.bf16.xpose.msra.mxu0 0
      %709 = vmatprep.subr.bf16.mxu0 0
      %710 = vmatpush1.bf16.xpose.msra.mxu0 0
      %711 = vmatprep.mubr.bf16.mxu0 0
      %712 = vmatmul.mubr.bf16.gmra.mrb[0].mxu0 %v674
      %v713 = vpop.f32.mrb[0].mxu0
      %v714 = vadd.f32 %v533, %v713
      %v715 = vpop.f32.mrb[0].mxu0
      %v716 = vpop.f32.mrb[0].mxu0
      %v717 = vpop.f32.mrb[0].mxu0
      %718 = vdwg.mxu0
      %v719 = vsel %vm534, %v576, -inf
      %720 = vmax.xlane.f32.xlu0 %v719
      %v721 = vpop.xlane.xlu0 %720
      %v722 = vsel %vm534, %v622, -inf
      %723 = vmax.xlane.f32.xlu0 %v722
      %v724 = vpop.xlane.xlu0 %723
      %v725 = vsel %vm534, %v668, -inf
      %726 = vmax.xlane.f32.xlu0 %v725
      %v727 = vpop.xlane.xlu0 %726
      %v728 = vsel %vm534, %v714, -inf
      %729 = vmax.xlane.f32.xlu0 %v728
      %v730 = vpop.xlane.xlu0 %729
      %v731 = vsub.f32 %v576, %v721
      %v732 = vsub.f32 %v622, %v724
      %v733 = vsub.f32 %v668, %v727
      %v734 = vsub.f32 %v714, %v730
      %v735 = vmul.f32 %v731, 1.442695
      %v736 = vpow.pop %v735
      %v737 = vmul.f32 %v732, 1.442695
      %v738 = vpow.pop %v737
      %v739 = vmul.f32 %v733, 1.442695
      %v740 = vpow.pop %v739
      %v741 = vmul.f32 %v734, 1.442695
      %v742 = vpow.pop %v741
      %v743 = vsel %vm534, %v736, 0.0
      %744 = vadd.xlane.f32.xlu0 %v743
      %v745 = vpop.xlane.xlu0 %744
      %v746 = vsel %vm534, %v738, 0.0
      %747 = vadd.xlane.f32.xlu0 %v746
      %v748 = vpop.xlane.xlu0 %747
      %v749 = vsel %vm534, %v740, 0.0
      %750 = vadd.xlane.f32.xlu0 %v749
      %v751 = vpop.xlane.xlu0 %750
      %v752 = vsel %vm534, %v742, 0.0
      %753 = vadd.xlane.f32.xlu0 %v752
      %v754 = vpop.xlane.xlu0 %753
      %v755 = vrcp.pop %v745
      %v756 = vrcp.pop %v748
      %v757 = vrcp.pop %v751
      %v758 = vrcp.pop %v754
      %v759 = vmul.f32 %v736, %v755
      %v760 = vmul.f32 %v738, %v756
      %v761 = vmul.f32 %v740, %v757
      %v762 = vmul.f32 %v742, %v758
      %v763 = vpack.c.bf16 %v759, %v759
      %v764 = vpack.c.bf16 %v760, %v760
      %v765 = vpack.c.bf16 %v761, %v761
      %v766 = vpack.c.bf16 %v762, %v762
      %v768 = vsel %vm534, %v763, 0
      %vm770 = vcmask 1043456
      %v772 = vsel %vm770, %v521, 0
      %774 = vmatprep.subr.bf16.mxu0 0
      %775 = vmatpush1.bf16.msra.mxu0 %v772
      %776 = vmatprep.subr.bf16.mxu0 0
      %777 = vmatpush1.bf16.msra.mxu0 0
      %778 = vmatprep.subr.bf16.mxu0 0
      %779 = vmatpush1.bf16.msra.mxu0 0
      %780 = vmatprep.subr.bf16.mxu0 0
      %781 = vmatpush1.bf16.msra.mxu0 0
      %782 = vmatprep.subr.bf16.mxu0 0
      %783 = vmatpush1.bf16.msra.mxu0 0
      %784 = vmatprep.subr.bf16.mxu0 0
      %785 = vmatpush1.bf16.msra.mxu0 0
      %786 = vmatprep.subr.bf16.mxu0 0
      %787 = vmatpush1.bf16.msra.mxu0 0
      %788 = vmatprep.subr.bf16.mxu0 0
      %789 = vmatpush1.bf16.msra.mxu0 0
      %790 = vmatprep.subr.bf16.mxu0 0
      %791 = vmatpush1.bf16.msra.mxu0 0
      %792 = vmatprep.subr.bf16.mxu0 0
      %793 = vmatpush1.bf16.msra.mxu0 0
      %794 = vmatprep.subr.bf16.mxu0 0
      %795 = vmatpush1.bf16.msra.mxu0 0
      %796 = vmatprep.subr.bf16.mxu0 0
      %797 = vmatpush1.bf16.msra.mxu0 0
      %798 = vmatprep.subr.bf16.mxu0 0
      %799 = vmatpush1.bf16.msra.mxu0 0
      %800 = vmatprep.subr.bf16.mxu0 0
      %801 = vmatpush1.bf16.msra.mxu0 0
      %802 = vmatprep.subr.bf16.mxu0 0
      %803 = vmatpush1.bf16.msra.mxu0 0
      %804 = vmatprep.subr.bf16.mxu0 0
      %805 = vmatpush1.bf16.msra.mxu0 0
      %806 = vmatprep.mubr.bf16.mxu0 0
      %807 = vmatmul.mubr.bf16.gmra.mrb[0].mxu0 %v768
      %v808 = vpop.f32.mrb[0].mxu0
      %v809 = vadd.f32 0.0, %v808
      %v810 = vpop.f32.mrb[0].mxu0
      %v811 = vpop.f32.mrb[0].mxu0
      %v812 = vpop.f32.mrb[0].mxu0
      %813 = vdwg.mxu0
      %v815 = vsel %vm534, %v764, 0
      %v818 = vsel %vm770, %v522, 0
      %820 = vmatprep.subr.bf16.mxu0 0
      %821 = vmatpush1.bf16.msra.mxu0 %v818
      %822 = vmatprep.subr.bf16.mxu0 0
      %823 = vmatpush1.bf16.msra.mxu0 0
      %824 = vmatprep.subr.bf16.mxu0 0
      %825 = vmatpush1.bf16.msra.mxu0 0
      %826 = vmatprep.subr.bf16.mxu0 0
      %827 = vmatpush1.bf16.msra.mxu0 0
      %828 = vmatprep.subr.bf16.mxu0 0
      %829 = vmatpush1.bf16.msra.mxu0 0
      %830 = vmatprep.subr.bf16.mxu0 0
      %831 = vmatpush1.bf16.msra.mxu0 0
      %832 = vmatprep.subr.bf16.mxu0 0
      %833 = vmatpush1.bf16.msra.mxu0 0
      %834 = vmatprep.subr.bf16.mxu0 0
      %835 = vmatpush1.bf16.msra.mxu0 0
      %836 = vmatprep.subr.bf16.mxu0 0
      %837 = vmatpush1.bf16.msra.mxu0 0
      %838 = vmatprep.subr.bf16.mxu0 0
      %839 = vmatpush1.bf16.msra.mxu0 0
      %840 = vmatprep.subr.bf16.mxu0 0
      %841 = vmatpush1.bf16.msra.mxu0 0
      %842 = vmatprep.subr.bf16.mxu0 0
      %843 = vmatpush1.bf16.msra.mxu0 0
      %844 = vmatprep.subr.bf16.mxu0 0
      %845 = vmatpush1.bf16.msra.mxu0 0
      %846 = vmatprep.subr.bf16.mxu0 0
      %847 = vmatpush1.bf16.msra.mxu0 0
      %848 = vmatprep.subr.bf16.mxu0 0
      %849 = vmatpush1.bf16.msra.mxu0 0
      %850 = vmatprep.subr.bf16.mxu0 0
      %851 = vmatpush1.bf16.msra.mxu0 0
      %852 = vmatprep.mubr.bf16.mxu0 0
      %853 = vmatmul.mubr.bf16.gmra.mrb[0].mxu0 %v815
      %v854 = vpop.f32.mrb[0].mxu0
      %v855 = vadd.f32 0.0, %v854
      %v856 = vpop.f32.mrb[0].mxu0
      %v857 = vpop.f32.mrb[0].mxu0
      %v858 = vpop.f32.mrb[0].mxu0
      %859 = vdwg.mxu0
      %v861 = vsel %vm534, %v765, 0
      %v864 = vsel %vm770, %v523, 0
      %866 = vmatprep.subr.bf16.mxu0 0
      %867 = vmatpush1.bf16.msra.mxu0 %v864
      %868 = vmatprep.subr.bf16.mxu0 0
      %869 = vmatpush1.bf16.msra.mxu0 0
      %870 = vmatprep.subr.bf16.mxu0 0
      %871 = vmatpush1.bf16.msra.mxu0 0
      %872 = vmatprep.subr.bf16.mxu0 0
      %873 = vmatpush1.bf16.msra.mxu0 0
      %874 = vmatprep.subr.bf16.mxu0 0
      %875 = vmatpush1.bf16.msra.mxu0 0
      %876 = vmatprep.subr.bf16.mxu0 0
      %877 = vmatpush1.bf16.msra.mxu0 0
      %878 = vmatprep.subr.bf16.mxu0 0
      %879 = vmatpush1.bf16.msra.mxu0 0
      %880 = vmatprep.subr.bf16.mxu0 0
      %881 = vmatpush1.bf16.msra.mxu0 0
      %882 = vmatprep.subr.bf16.mxu0 0
      %883 = vmatpush1.bf16.msra.mxu0 0
      %884 = vmatprep.subr.bf16.mxu0 0
      %885 = vmatpush1.bf16.msra.mxu0 0
      %886 = vmatprep.subr.bf16.mxu0 0
      %887 = vmatpush1.bf16.msra.mxu0 0
      %888 = vmatprep.subr.bf16.mxu0 0
      %889 = vmatpush1.bf16.msra.mxu0 0
      %890 = vmatprep.subr.bf16.mxu0 0
      %891 = vmatpush1.bf16.msra.mxu0 0
      %892 = vmatprep.subr.bf16.mxu0 0
      %893 = vmatpush1.bf16.msra.mxu0 0
      %894 = vmatprep.subr.bf16.mxu0 0
      %895 = vmatpush1.bf16.msra.mxu0 0
      %896 = vmatprep.subr.bf16.mxu0 0
      %897 = vmatpush1.bf16.msra.mxu0 0
      %898 = vmatprep.mubr.bf16.mxu0 0
      %899 = vmatmul.mubr.bf16.gmra.mrb[0].mxu0 %v861
      %v900 = vpop.f32.mrb[0].mxu0
      %v901 = vadd.f32 0.0, %v900
      %v902 = vpop.f32.mrb[0].mxu0
      %v903 = vpop.f32.mrb[0].mxu0
      %v904 = vpop.f32.mrb[0].mxu0
      %905 = vdwg.mxu0
      %v907 = vsel %vm534, %v766, 0
      %v910 = vsel %vm770, %v524, 0
      %912 = vmatprep.subr.bf16.mxu0 0
      %913 = vmatpush1.bf16.msra.mxu0 %v910
      %914 = vmatprep.subr.bf16.mxu0 0
      %915 = vmatpush1.bf16.msra.mxu0 0
      %916 = vmatprep.subr.bf16.mxu0 0
      %917 = vmatpush1.bf16.msra.mxu0 0
      %918 = vmatprep.subr.bf16.mxu0 0
      %919 = vmatpush1.bf16.msra.mxu0 0
      %920 = vmatprep.subr.bf16.mxu0 0
      %921 = vmatpush1.bf16.msra.mxu0 0
      %922 = vmatprep.subr.bf16.mxu0 0
      %923 = vmatpush1.bf16.msra.mxu0 0
      %924 = vmatprep.subr.bf16.mxu0 0
      %925 = vmatpush1.bf16.msra.mxu0 0
      %926 = vmatprep.subr.bf16.mxu0 0
      %927 = vmatpush1.bf16.msra.mxu0 0
      %928 = vmatprep.subr.bf16.mxu0 0
      %929 = vmatpush1.bf16.msra.mxu0 0
      %930 = vmatprep.subr.bf16.mxu0 0
      %931 = vmatpush1.bf16.msra.mxu0 0
      %932 = vmatprep.subr.bf16.mxu0 0
      %933 = vmatpush1.bf16.msra.mxu0 0
      %934 = vmatprep.subr.bf16.mxu0 0
      %935 = vmatpush1.bf16.msra.mxu0 0
      %936 = vmatprep.subr.bf16.mxu0 0
      %937 = vmatpush1.bf16.msra.mxu0 0
      %938 = vmatprep.subr.bf16.mxu0 0
      %939 = vmatpush1.bf16.msra.mxu0 0
      %940 = vmatprep.subr.bf16.mxu0 0
      %941 = vmatpush1.bf16.msra.mxu0 0
      %942 = vmatprep.subr.bf16.mxu0 0
      %943 = vmatpush1.bf16.msra.mxu0 0
      %944 = vmatprep.mubr.bf16.mxu0 0
      %945 = vmatmul.mubr.bf16.gmra.mrb[0].mxu0 %v907
      %v946 = vpop.f32.mrb[0].mxu0
      %v947 = vadd.f32 0.0, %v946
      %v948 = vpop.f32.mrb[0].mxu0
      %v949 = vpop.f32.mrb[0].mxu0
      %v950 = vpop.f32.mrb[0].mxu0
      %951 = vdwg.mxu0
      %953 = vrot.lane.b32.xlu0 %v855, 8
      %v954 = vpop.permute.xlu0 %953
      %957 = vrot.lane.b32.xlu0 %v901, 16
      %v958 = vpop.permute.xlu0 %957
      %961 = vrot.lane.b32.xlu0 %v947, 24
      %v962 = vpop.permute.xlu0 %961
      %v964 = vsel %vm534, %v809, %v954
      %vm965 = vcmask 130048
      %v966 = vsel %vm965, %v964, %v958
      %vm967 = vcmask 195584
      %v968 = vsel %vm967, %v966, %v962
      %v969 = vpack.c.bf16 %v968, %v968
      %v970 = vld [vmem:[%s4] sm:$0xf]
      %v971 = vld [vmem:[%s4 + $0x4] sm:$0xf]
      %v972 = vld [vmem:[%s4 + $0x8] sm:$0xf]
      %v973 = vld [vmem:[%s4 + $0xc] sm:$0xf]
      %v974 = vld [vmem:[%s5] sm:$0x1]
      %v976 = vlaneseq
      %v977 = vshrl.u32 %v976, 7
      %v978 = vsub.s32 0, %v977
      %v979 = vrot.slane %v974, %v978
      %v985 = vunpack.c.l.b16 %v970
      %v986 = vunpack.c.l.b16 %v971
      %v987 = vunpack.c.l.b16 %v972
      %v988 = vunpack.c.l.b16 %v973
      %v989 = vpack.c.b16 %v986, %v985
      %v990 = vpack.c.b16 %v988, %v987
      %vm993 = vcmask 261120
      %v995 = vsel %vm993, %v969, 0
      %997 = vmatprep.subr.bf16.mxu0 0
      %998 = vmatpush1.bf16.msra.mxu0 %v989
      %999 = vmatprep.subr.bf16.mxu0 0
      %1000 = vmatpush1.bf16.msra.mxu0 %v990
      %1001 = vmatprep.subr.bf16.mxu0 0
      %1002 = vmatpush1.bf16.msra.mxu0 0
      %1003 = vmatprep.subr.bf16.mxu0 0
      %1004 = vmatpush1.bf16.msra.mxu0 0
      %1005 = vmatprep.subr.bf16.mxu0 0
      %1006 = vmatpush1.bf16.msra.mxu0 0
      %1007 = vmatprep.subr.bf16.mxu0 0
      %1008 = vmatpush1.bf16.msra.mxu0 0
      %1009 = vmatprep.subr.bf16.mxu0 0
      %1010 = vmatpush1.bf16.msra.mxu0 0
      %1011 = vmatprep.subr.bf16.mxu0 0
      %1012 = vmatpush1.bf16.msra.mxu0 0
      %1013 = vmatprep.subr.bf16.mxu0 0
      %1014 = vmatpush1.bf16.msra.mxu0 0
      %1015 = vmatprep.subr.bf16.mxu0 0
      %1016 = vmatpush1.bf16.msra.mxu0 0
      %1017 = vmatprep.subr.bf16.mxu0 0
      %1018 = vmatpush1.bf16.msra.mxu0 0
      %1019 = vmatprep.subr.bf16.mxu0 0
      %1020 = vmatpush1.bf16.msra.mxu0 0
      %1021 = vmatprep.subr.bf16.mxu0 0
      %1022 = vmatpush1.bf16.msra.mxu0 0
      %1023 = vmatprep.subr.bf16.mxu0 0
      %1024 = vmatpush1.bf16.msra.mxu0 0
      %1025 = vmatprep.subr.bf16.mxu0 0
      %1026 = vmatpush1.bf16.msra.mxu0 0
      %1027 = vmatprep.subr.bf16.mxu0 0
      %1028 = vmatpush1.bf16.msra.mxu0 0
      %1029 = vmatprep.mubr.bf16.mxu0 0
      %1030 = vmatmul.mubr.bf16.gmra.mrb[0].mxu0 %v995
      %v1031 = vpop.f32.mrb[0].mxu0
      %v1032 = vadd.f32 %v979, %v1031
      %v1033 = vpop.f32.mrb[0].mxu0
      %v1034 = vpop.f32.mrb[0].mxu0
      %v1035 = vpop.f32.mrb[0].mxu0
      %1036 = vdwg.mxu0
      %v1037 = vadd.f32 %v512, %v1032
      %v1038 = vld [vmem:[%s6] sm:$0x1]
      %v1039 = vld [vmem:[%s7] sm:$0x1]
      %v1040 = vsel %vm993, %v1037, 0.0
      %1041 = vadd.xlane.f32.xlu0 %v1040
      %v1042 = vpop.xlane.xlu0 %1041
      %v1043 = vrcp.pop 32.0
      %v1044 = vmul.f32 %v1042, %v1043
      %v1045 = vsub.f32 %v1037, %v1044
      %v1046 = vmul.f32 %v1045, %v1045
      %v1047 = vsel %vm993, %v1046, 0.0
      %1048 = vadd.xlane.f32.xlu0 %v1047
      %v1049 = vpop.xlane.xlu0 %1048
      %v1050 = vmul.f32 %v1049, %v1043
      %v1051 = vadd.f32 %v1050, 32.0
      %v1052 = vrsqrt.pop %v1051
      %v1053 = vmul.f32 %v1045, %v1052
      %v1055 = vlaneseq
      %v1056 = vshrl.u32 %v1055, 7
      %v1057 = vsub.s32 0, %v1056
      %v1058 = vrot.slane %v1038, %v1057
      %v1060 = vmul.f32 %v1053, %v1058
      %v1062 = vlaneseq
      %v1063 = vshrl.u32 %v1062, 7
      %v1064 = vsub.s32 0, %v1063
      %v1065 = vrot.slane %v1039, %v1064
      %v1067 = vadd.f32 %v1060, %v1065
      %v1068 = vpack.c.bf16 %v1067, %v1067
      %v1069 = vld [vmem:[%s8] sm:$0xf]
      %v1070 = vld [vmem:[%s8 + $0x4] sm:$0xf]
      %v1071 = vld [vmem:[%s8 + $0x8] sm:$0xf]
      %v1072 = vld [vmem:[%s8 + $0xc] sm:$0xf]
      %v1073 = vld [vmem:[%s9] sm:$0x1]
      %v1075 = vlaneseq
      %v1076 = vshrl.u32 %v1075, 7
      %v1077 = vsub.s32 0, %v1076
      %v1078 = vrot.slane %v1073, %v1077
      %v1084 = vunpack.c.l.b16 %v1069
      %v1085 = vunpack.c.l.b16 %v1070
      %v1086 = vunpack.c.l.b16 %v1071
      %v1087 = vunpack.c.l.b16 %v1072
      %v1088 = vpack.c.b16 %v1085, %v1084
      %v1089 = vpack.c.b16 %v1087, %v1086
      %v1093 = vsel %vm993, %v1068, 0
      %1095 = vmatprep.subr.bf16.mxu0 0
      %1096 = vmatpush1.bf16.msra.mxu0 %v1088
      %1097 = vmatprep.subr.bf16.mxu0 0
      %1098 = vmatpush1.bf16.msra.mxu0 %v1089
      %1099 = vmatprep.subr.bf16.mxu0 0
      %1100 = vmatpush1.bf16.msra.mxu0 0
      %1101 = vmatprep.subr.bf16.mxu0 0
      %1102 = vmatpush1.bf16.msra.mxu0 0
      %1103 = vmatprep.subr.bf16.mxu0 0
      %1104 = vmatpush1.bf16.msra.mxu0 0
      %1105 = vmatprep.subr.bf16.mxu0 0
      %1106 = vmatpush1.bf16.msra.mxu0 0
      %1107 = vmatprep.subr.bf16.mxu0 0
      %1108 = vmatpush1.bf16.msra.mxu0 0
      %1109 = vmatprep.subr.bf16.mxu0 0
      %1110 = vmatpush1.bf16.msra.mxu0 0
      %1111 = vmatprep.subr.bf16.mxu0 0
      %1112 = vmatpush1.bf16.msra.mxu0 0
      %1113 = vmatprep.subr.bf16.mxu0 0
      %1114 = vmatpush1.bf16.msra.mxu0 0
      %1115 = vmatprep.subr.bf16.mxu0 0
      %1116 = vmatpush1.bf16.msra.mxu0 0
      %1117 = vmatprep.subr.bf16.mxu0 0
      %1118 = vmatpush1.bf16.msra.mxu0 0
      %1119 = vmatprep.subr.bf16.mxu0 0
      %1120 = vmatpush1.bf16.msra.mxu0 0
      %1121 = vmatprep.subr.bf16.mxu0 0
      %1122 = vmatpush1.bf16.msra.mxu0 0
      %1123 = vmatprep.subr.bf16.mxu0 0
      %1124 = vmatpush1.bf16.msra.mxu0 0
      %1125 = vmatprep.subr.bf16.mxu0 0
      %1126 = vmatpush1.bf16.msra.mxu0 0
      %1127 = vmatprep.mubr.bf16.mxu0 0
      %1128 = vmatmul.mubr.bf16.gmra.mrb[0].mxu0 %v1093
      %v1129 = vpop.f32.mrb[0].mxu0
      %v1130 = vadd.f32 %v1078, %v1129
      %v1131 = vpop.f32.mrb[0].mxu0
      %v1132 = vpop.f32.mrb[0].mxu0
      %v1133 = vpop.f32.mrb[0].mxu0
      %1134 = vdwg.mxu0
      %v1135 = vmul.f32 %v1130, 0.5
      %v1136 = vmul.f32 %v1130, 0.70710677
      %v1137 = verf.f32.pop %v1136
      %v1138 = vadd.f32 %v1137, 1.0
      %v1139 = vmul.f32 %v1135, %v1138
      %v1140 = vpack.c.bf16 %v1139, %v1139
      %v1141 = vld [vmem:[%s10] sm:$0xf]
      %v1142 = vld [vmem:[%s10 + $0x4] sm:$0xf]
      %v1143 = vld [vmem:[%s10 + $0x8] sm:$0xf]
      %v1144 = vld [vmem:[%s10 + $0xc] sm:$0xf]
      %v1145 = vld [vmem:[%s10 + $0x10] sm:$0xf]
      %v1146 = vld [vmem:[%s10 + $0x14] sm:$0xf]
      %v1147 = vld [vmem:[%s10 + $0x18] sm:$0xf]
      %v1148 = vld [vmem:[%s10 + $0x1c] sm:$0xf]
      %v1149 = vld [vmem:[%s10 + $0x20] sm:$0xf]
      %v1150 = vld [vmem:[%s10 + $0x24] sm:$0xf]
      %v1151 = vld [vmem:[%s10 + $0x28] sm:$0xf]
      %v1152 = vld [vmem:[%s10 + $0x2c] sm:$0xf]
      %v1153 = vld [vmem:[%s10 + $0x30] sm:$0xf]
      %v1154 = vld [vmem:[%s10 + $0x34] sm:$0xf]
      %v1155 = vld [vmem:[%s10 + $0x38] sm:$0xf]
      %v1156 = vld [vmem:[%s10 + $0x3c] sm:$0xf]
      %v1157 = vld [vmem:[%s11] sm:$0x1]
      %v1159 = vlaneseq
      %v1160 = vshrl.u32 %v1159, 7
      %v1161 = vsub.s32 0, %v1160
      %v1162 = vrot.slane %v1157, %v1161
      %v1180 = vunpack.c.l.b16 %v1141
      %v1181 = vunpack.c.l.b16 %v1142
      %v1182 = vunpack.c.l.b16 %v1143
      %v1183 = vunpack.c.l.b16 %v1144
      %v1184 = vunpack.c.l.b16 %v1145
      %v1185 = vunpack.c.l.b16 %v1146
      %v1186 = vunpack.c.l.b16 %v1147
      %v1187 = vunpack.c.l.b16 %v1148
      %v1188 = vunpack.c.l.b16 %v1149
      %v1189 = vunpack.c.l.b16 %v1150
      %v1190 = vunpack.c.l.b16 %v1151
      %v1191 = vunpack.c.l.b16 %v1152
      %v1192 = vunpack.c.l.b16 %v1153
      %v1193 = vunpack.c.l.b16 %v1154
      %v1194 = vunpack.c.l.b16 %v1155
      %v1195 = vunpack.c.l.b16 %v1156
      %v1196 = vpack.c.b16 %v1181, %v1180
      %v1197 = vpack.c.b16 %v1183, %v1182
      %v1198 = vpack.c.b16 %v1185, %v1184
      %v1199 = vpack.c.b16 %v1187, %v1186
      %v1200 = vpack.c.b16 %v1189, %v1188
      %v1201 = vpack.c.b16 %v1191, %v1190
      %v1202 = vpack.c.b16 %v1193, %v1192
      %v1203 = vpack.c.b16 %v1195, %v1194
      %1212 = vmatprep.subr.bf16.mxu0 0
      %1213 = vmatpush1.bf16.msra.mxu0 %v1196
      %1214 = vmatprep.subr.bf16.mxu0 0
      %1215 = vmatpush1.bf16.msra.mxu0 %v1197
      %1216 = vmatprep.subr.bf16.mxu0 0
      %1217 = vmatpush1.bf16.msra.mxu0 %v1198
      %1218 = vmatprep.subr.bf16.mxu0 0
      %1219 = vmatpush1.bf16.msra.mxu0 %v1199
      %1220 = vmatprep.subr.bf16.mxu0 0
      %1221 = vmatpush1.bf16.msra.mxu0 %v1200
      %1222 = vmatprep.subr.bf16.mxu0 0
      %1223 = vmatpush1.bf16.msra.mxu0 %v1201
      %1224 = vmatprep.subr.bf16.mxu0 0
      %1225 = vmatpush1.bf16.msra.mxu0 %v1202
      %1226 = vmatprep.subr.bf16.mxu0 0
      %1227 = vmatpush1.bf16.msra.mxu0 %v1203
      %1228 = vmatprep.subr.bf16.mxu0 0
      %1229 = vmatpush1.bf16.msra.mxu0 0
      %1230 = vmatprep.subr.bf16.mxu0 0
      %1231 = vmatpush1.bf16.msra.mxu0 0
      %1232 = vmatprep.subr.bf16.mxu0 0
      %1233 = vmatpush1.bf16.msra.mxu0 0
      %1234 = vmatprep.subr.bf16.mxu0 0
      %1235 = vmatpush1.bf16.msra.mxu0 0
      %1236 = vmatprep.subr.bf16.mxu0 0
      %1237 = vmatpush1.bf16.msra.mxu0 0
      %1238 = vmatprep.subr.bf16.mxu0 0
      %1239 = vmatpush1.bf16.msra.mxu0 0
      %1240 = vmatprep.subr.bf16.mxu0 0
      %1241 = vmatpush1.bf16.msra.mxu0 0
      %1242 = vmatprep.subr.bf16.mxu0 0
      %1243 = vmatpush1.bf16.msra.mxu0 0
      %1244 = vmatprep.mubr.bf16.mxu0 0
      %1245 = vmatmul.mubr.bf16.gmra.mrb[0].mxu0 %v1140
      %v1246 = vpop.f32.mrb[0].mxu0
      %v1247 = vadd.f32 %v1162, %v1246
      %v1248 = vpop.f32.mrb[0].mxu0
      %v1249 = vpop.f32.mrb[0].mxu0
      %v1250 = vpop.f32.mrb[0].mxu0
      %1251 = vdwg.mxu0
      %v1252 = vadd.f32 %v1037, %v1247
      %1253 = vst.msk [vmem:[%s510] sm:$0xff] %vm993, %v1252
      %p1254 = scmp.lt.s32.totalorder %s27, 1
      %s1255 = scalar_select %p1254, %s27, 1
      %p1256 = scmp.lt.s32.totalorder %s28, 0
      %s1257 = scalar_select %p1256, %s28, 0
      %s1258 = sadd.s32 %s1257, %s1255
      %s1259 = smul.addr %s1258, 8
      %s1260 = scalar_lea.vmem %s12, %s1259
      // Predicated region
      $region69: #{gpt_forward.6} parent=67 // pred_check
        %p1261 = pneg %p331
      $region70: #{gpt_forward.6} parent=67 // pred_check_branch
        %1263 = sbr.rel (%p1261) target = $region72
      $region71: #{gpt_forward.6} parent=67 // pred_region
        _
      $region72: #{gpt_forward.6} parent=67 // pred_fallthru
        _
    $region68: #{gpt_forward.6} parent=5 // pred_fallthru
      _
    %p1264 = scmp.le.s32.totalorder 2, %s18
    // Predicated region
    $region73: #{gpt_forward.6} parent=5 // pred_check
      %p1265 = pneg %p1264
    $region74: #{gpt_forward.6} parent=5 // pred_check_branch
      %1267 = sbr.rel (%p1265) target = $region76
    $region75: #{gpt_forward.6} parent=5 // pred_region
      %s1268 = ssub.s32 %s18, 2
      // Predicated region
      $region77: #{gpt_forward.6} parent=75 // pred_check
        %p1269 = pneg %p337
      $region78: #{gpt_forward.6} parent=75 // pred_check_branch
        %1271 = sbr.rel (%p1269) target = $region80
      $region79: #{gpt_forward.6} parent=75 // pred_region
        %p1272 = scmp.lt.s32.totalorder %s29, 1
        %s1273 = scalar_select %p1272, %s29, 1
        %p1274 = scmp.lt.s32.totalorder %s30, 0
        %s1275 = scalar_select %p1274, %s30, 0
        %s1276 = sadd.s32 %s1275, %s1273
        %s1277 = smul.addr %s1276, 8
        %s1278 = scalar_lea.vmem %s12, %s1277
      $region80: #{gpt_forward.6} parent=75 // pred_fallthru
        _
    $region76: #{gpt_forward.6} parent=5 // pred_fallthru
      _
  $region6: #{gpt_forward.6} parent=0 // loop_footer
    %s22 = sadd.s32 1, %s18
  $region7: #{gpt_forward.6} parent=0 // loop_footer_branch
    %17 = sbr.rel target = $region3
  $region8: #{gpt_forward.6} parent=0 // loop_exit
    _

</llo_original>
